<compile_context>
chip_gen: v5e
topology: v5e:2x2
jax: 0.10.0
libtpu: 0.0.40
codegen_flags: <defaults>
</compile_context>

<pallas_src>
import numpy as np
import jax
import jax.numpy as jnp
from jax.experimental import pallas as pl
from jax.experimental.pallas import tpu as pltpu

N_DOF = 2                 # n_dof
N_WIDTH = 128             # n_width
EPS = 1e-5                # diagonal_epsilon

_MAX_BT = 8192            # batch tile (lanes); sweepable in {2048, 4096, 8192}
_MIN_BT = 512


def _pick_bt(batch):
    """Largest tile that still leaves >=2 grid steps (when the batch allows it)."""
    bt = _MAX_BT
    while bt > _MIN_BT and pl.cdiv(batch, bt) < 2:
        bt //= 2
    return bt


# ----------------------------------------------------------------------------
# Pallas kernel: whole _dyn_model hot path for one batch tile (lane = batch).
# ----------------------------------------------------------------------------
def delan_kernel(x_ref, w0_ref, b0_ref, whead_ref, bhead_ref, wcomb_ref, out_ref):
    x = x_ref[...]                            # (8, BT)
    qd0, qd1 = x[2:3, :], x[3:4, :]
    qdd0, qdd1 = x[4:5, :], x[5:6, :]

    # ---- hidden LagrangianLayer (f32, exact ReLU / ReLUDer masks) ------------
    a0 = jnp.dot(w0_ref[...], x, preferred_element_type=jnp.float32) + b0_ref[...]
    y = jnp.maximum(a0, 0.0)                  # (128, BT)
    # ReLUDer == ceil(clamp(a0,0,1)) == (a0 > 0); exactly 0/1 -> lossless bf16.
    gp0 = jnp.where(a0 > 0.0, 1.0, 0.0).astype(jnp.bfloat16)

    # ---- value heads (f32) ----------------------------------------------------
    # rows 0..2: [a_lo, a_ld0, a_ld1]; rows 3..7 are zero padding.
    heads = (jnp.dot(whead_ref[...], y, preferred_element_type=jnp.float32)
             + bhead_ref[...])

    # ---- fused derivative heads (single bf16 matmul over gp0) ----------------
    # rows: [dL00/dq0, dL10/dq0, dL11/dq0, dV/dq0,
    #        dL00/dq1, dL10/dq1, dL11/dq1, dV/dq1]
    Z = jnp.dot(wcomb_ref[...], gp0, preferred_element_type=jnp.float32)   # (8, BT)

    lo = heads[0:1, :]
    ald = heads[1:3, :]                       # (2, BT) [a_ld0; a_ld1]
    ddiag = jnp.maximum(ald, 0.0)             # net_ld uses ReLU
    d0, d1 = ddiag[0:1, :], ddiag[1:2, :]

    # ReLUDer factors for the diagonal head; linear heads (lo, g) get 1.
    one = jnp.ones_like(lo)
    dfac = jnp.concatenate(
        [(ald[0:1, :] > 0.0).astype(jnp.float32), one,
         (ald[1:2, :] > 0.0).astype(jnp.float32), one], axis=0)            # (4, BT)
    der_q0 = Z[0:4, :] * dfac                 # [dL00/dq0, dL10/dq0, dL11/dq0, g0]
    der_q1 = Z[4:8, :] * dfac                 # [dL00/dq1, dL10/dq1, dL11/dq1, g1]
    g0, g1 = der_q0[3:4, :], der_q1[3:4, :]

    # Ldt entries and dV/dt in one stacked op: E = d(.)/dq . qd
    E = der_q0 * qd0 + der_q1 * qd1           # (4, BT): [e00, e10, e11, dVdt]
    e00, e10, e11, dVdt = E[0:1, :], E[1:2, :], E[2:3, :], E[3:4, :]

    # ---- factorized 2x2 dynamics: L = [[d0,0],[lo,d1]], Ldt = [[e00,0],[e10,e11]]
    u0 = d0 * qd0 + lo * qd1                  # u = L^T qd
    u1 = d1 * qd1
    v0 = e00 * qd0 + e10 * qd1                # v = Ldt^T qd
    v1 = e11 * qd1
    s0 = d0 * qdd0 + lo * qdd1                # s = L^T qdd
    s1 = d1 * qdd1

    Hqdd0 = d0 * s0 + EPS * qdd0              # H qdd = L s + eps*qdd
    Hqdd1 = lo * s0 + d1 * s1 + EPS * qdd1
    Hdtqd0 = d0 * v0 + e00 * u0               # Hdt qd = L v + Ldt u
    Hdtqd1 = lo * v0 + d1 * v1 + e10 * u0 + e11 * u1

    # quad_k = qd^T (Ldq_k L^T + L Ldq_k^T) qd = 2 (Ldq_k^T qd).(L^T qd)
    t1 = qd1 * u1
    p0 = der_q0[0:1, :] * qd0 + der_q0[1:2, :] * qd1
    p1 = der_q1[0:1, :] * qd0 + der_q1[1:2, :] * qd1
    quad0 = 2.0 * (p0 * u0 + der_q0[2:3, :] * t1)
    quad1 = 2.0 * (p1 * u0 + der_q1[2:3, :] * t1)

    # direct row stores (no in-kernel concatenate)
    out_ref[0:1, :] = Hqdd0 + (Hdtqd0 - 0.5 * quad0) + g0
    out_ref[1:2, :] = Hqdd1 + (Hdtqd1 - 0.5 * quad1) + g1
    out_ref[2:3, :] = (qd0 * Hqdd0 + qd1 * Hqdd1) \
        + 0.5 * (qd0 * Hdtqd0 + qd1 * Hdtqd1) + dVdt


# ----------------------------------------------------------------------------
# Parameter packing (do once at init for production use).
# ----------------------------------------------------------------------------
def pack_params(params):
    W0 = params["W0"].astype(jnp.float32)                        # (128, 2)
    W0p = jnp.zeros((N_WIDTH, 8), jnp.float32).at[:, :N_DOF].set(W0)
    b0 = params["b0"].reshape(N_WIDTH, 1).astype(jnp.float32)

    # value heads: rows [lo, ld0, ld1] + zero padding to 8 rows (f32)
    Whead = jnp.zeros((8, N_WIDTH), jnp.float32).at[0:3, :].set(
        jnp.concatenate([params["Wlo"], params["Wld"]], axis=0).astype(jnp.float32))
    bhead = jnp.zeros((8, 1), jnp.float32).at[0:3, 0].set(
        jnp.concatenate([params["blo"], params["bld"]]).astype(jnp.float32))

    # pre-combined derivative weights (bf16): Wcomb[4k+o, h] = Whead_o[h]*W0[h,k]
    # head order o: [L00 (ld0), L10 (lo), L11 (ld1), V (g)]
    Wder = jnp.concatenate(
        [params["Wld"][0:1], params["Wlo"], params["Wld"][1:2], params["Wg"]],
        axis=0).astype(jnp.float32)                              # (4, 128)
    Wcomb = jnp.concatenate(
        [Wder * W0[:, 0][None, :], Wder * W0[:, 1][None, :]], axis=0)   # (8, 128)
    return W0p, b0, Whead, bhead, Wcomb.astype(jnp.bfloat16)


# ----------------------------------------------------------------------------
# Slab-level entry point: (8, B) lane-major slab in, (3, Bp) slab out.
# ----------------------------------------------------------------------------
def delan_forward_slab(x, packed):
    W0p, b0, Whead, bhead, Wcomb = packed
    B = x.shape[1]
    bt = _pick_bt(B)
    Bp = pl.cdiv(B, bt) * bt
    if Bp != B:
        x = jnp.pad(x, ((0, 0), (0, Bp - B)))

    flops = int(Bp) * (2 * N_WIDTH * 8          # hidden matmul
                       + 2 * 8 * N_WIDTH        # value heads
                       + 2 * 8 * N_WIDTH        # fused derivative matmul
                       + 96)                    # 2x2 dynamics algebra
    bytes_accessed = int(Bp) * (8 + 3) * 4 \
        + 4 * (N_WIDTH * 8 + N_WIDTH + 8 * N_WIDTH + 8) + 2 * 8 * N_WIDTH

    return pl.pallas_call(
        delan_kernel,
        out_shape=jax.ShapeDtypeStruct((3, Bp), jnp.float32),
        grid_spec=pltpu.PrefetchScalarGridSpec(
            num_scalar_prefetch=0,
            grid=(Bp // bt,),
            in_specs=[
                pl.BlockSpec((8, bt), lambda i: (0, i)),
                pl.BlockSpec((N_WIDTH, 8), lambda i: (0, 0)),
                pl.BlockSpec((N_WIDTH, 1), lambda i: (0, 0)),
                pl.BlockSpec((8, N_WIDTH), lambda i: (0, 0)),
                pl.BlockSpec((8, 1), lambda i: (0, 0)),
                pl.BlockSpec((8, N_WIDTH), lambda i: (0, 0)),
            ],
            out_specs=pl.BlockSpec((3, bt), lambda i: (0, i)),
        ),
        compiler_params=pltpu.CompilerParams(
            dimension_semantics=("parallel",),
            vmem_limit_bytes=48 * 1024 * 1024),
        cost_estimate=pl.CostEstimate(
            flops=flops, transcendentals=0, bytes_accessed=bytes_accessed),
    )(x, W0p, b0, Whead, bhead, Wcomb)


# ----------------------------------------------------------------------------
# PyTorch-compatible entry point: (q, qd, qdd) -> (tau, dEdt).
# NOTE(perf): for peak throughput keep inputs in the (8, B) lane-major slab
# layout upstream and call delan_forward_slab + pack_params directly; the
# pack / transpose below is an extra HBM pass kept only for API parity.
# ----------------------------------------------------------------------------
@jax.jit
def delan_forward(q, qd, qdd, params):
    B = q.shape[0]
    x = jnp.zeros((8, B), jnp.float32)
    x = x.at[0:2].set(q.T.astype(jnp.float32))
    x = x.at[2:4].set(qd.T.astype(jnp.float32))
    x = x.at[4:6].set(qdd.T.astype(jnp.float32))
    out = delan_forward_slab(x, pack_params(params))
    tau = out[0:2, :B].T          # (B, n_dof)
    dedt = out[2, :B]             # (B,)
    return tau, dedt


# ----------------------------------------------------------------------------
# Deterministic parameter init (shapes match DeepLagrangianNetwork.__init__).
# ----------------------------------------------------------------------------
def init_params(key):
    g_hidden = float(np.sqrt(2.0))
    g_output = 0.125
    b_init = 0.1

    def xavier_normal(k, shape, gain):
        fan_out, fan_in = shape
        std = gain * np.sqrt(2.0 / (fan_in + fan_out))
        return (std * jax.random.normal(k, shape)).astype(jnp.float32)

    k0, k1, k2, k3 = jax.random.split(key, 4)
    return dict(
        W0=xavier_normal(k0, (N_WIDTH, N_DOF), g_hidden),        # hidden layer
        b0=jnp.full((N_WIDTH,), b_init, jnp.float32),
        Wg=xavier_normal(k1, (1, N_WIDTH), g_output),            # net_g
        bg=jnp.full((1,), b_init, jnp.float32),
        Wlo=xavier_normal(k2, (1, N_WIDTH), g_hidden),           # net_lo
        blo=jnp.full((1,), b_init, jnp.float32),
        Wld=xavier_normal(k3, (N_DOF, N_WIDTH), g_hidden),       # net_ld
        bld=jnp.full((N_DOF,), 0.1, jnp.float32),                # b_diag_init
    )


# ----------------------------------------------------------------------------
# Pure-JAX reference (direct transcription of the PyTorch _dyn_model), f32.
# ----------------------------------------------------------------------------
def delan_reference(q, qd, qdd, p):
    HI = jax.lax.Precision.HIGHEST
    n = N_DOF
    m = (n * n + n) // 2
    B = q.shape[0]
    eye = jnp.broadcast_to(jnp.eye(n), (B, n, n))

    a0 = jnp.dot(q, p["W0"].T, precision=HI) + p["b0"]
    y = jnp.maximum(a0, 0.0)
    gp0 = jnp.ceil(jnp.clip(a0, 0.0, 1.0))
    der = jnp.matmul(gp0[:, :, None] * p["W0"][None], eye, precision=HI)    # (B,H,n)

    l_lower = jnp.dot(y, p["Wlo"].T, precision=HI) + p["blo"]
    der_l_lower = jnp.matmul(
        jnp.ones_like(l_lower)[:, :, None] * p["Wlo"][None], der, precision=HI)

    a_ld = jnp.dot(y, p["Wld"].T, precision=HI) + p["bld"]
    l_diag = jnp.maximum(a_ld, 0.0)
    der_l_diag = jnp.matmul(
        jnp.ceil(jnp.clip(a_ld, 0.0, 1.0))[:, :, None] * p["Wld"][None], der,
        precision=HI)

    a_g = jnp.dot(y, p["Wg"].T, precision=HI) + p["bg"]
    der_V = jnp.matmul(jnp.ones_like(a_g)[:, :, None] * p["Wg"][None], der,
                       precision=HI)
    g = der_V[:, 0, :]

    idx_diag = (np.arange(n) + 1)
    idx_diag = (idx_diag * (idx_diag + 1) / 2 - 1).astype(int)
    idx_tril = np.extract([x not in idx_diag for x in np.arange(m)], np.arange(m))
    order = np.argsort(np.hstack((idx_diag, idx_tril)))
    idx = np.arange(m)[order]

    l = jnp.concatenate([l_diag, l_lower], axis=1)[:, idx]
    der_l = jnp.concatenate([der_l_diag, der_l_lower], axis=1)[:, idx, :]

    tr, tc = np.tril_indices(n)

    def low_tri(vec):
        L = jnp.zeros((vec.shape[0], n, n), vec.dtype)
        return L.at[:, tr, tc].set(vec)

    L = low_tri(l)
    LT = jnp.swapaxes(L, 1, 2)
    H = jnp.matmul(L, LT, precision=HI) + EPS * jnp.eye(n)
    qd3 = qd[:, :, None]
    qd4 = qd[:, None, :, None]

    Ldt = low_tri(jnp.matmul(der_l, qd3, precision=HI).reshape(-1, m))
    Hdt = (jnp.matmul(L, jnp.swapaxes(Ldt, 1, 2), precision=HI)
           + jnp.matmul(Ldt, LT, precision=HI))
    Ldq = low_tri(jnp.swapaxes(der_l, 2, 1).reshape(-1, m)).reshape(-1, n, n, n)
    Hdq = (jnp.matmul(Ldq, LT[:, None], precision=HI) +
           jnp.matmul(L[:, None], jnp.swapaxes(Ldq, 2, 3), precision=HI))

    Hdt_qd = jnp.matmul(Hdt, qd3, precision=HI).reshape(-1, n)
    quad_dq = jnp.matmul(jnp.swapaxes(qd4, 2, 3),
                         jnp.matmul(Hdq, qd4, precision=HI),
                         precision=HI).reshape(-1, n)
    c = Hdt_qd - 0.5 * quad_dq
    H_qdd = jnp.matmul(H, qdd[:, :, None], precision=HI).reshape(-1, n)
    tau = H_qdd + c + g

    qd_H_qdd = jnp.sum(qd * H_qdd, axis=1)
    qd_Hdt_qd = jnp.sum(qd * Hdt_qd, axis=1)
    dVdt = jnp.sum(qd * g, axis=1)
    dEdt = qd_H_qdd + 0.5 * qd_Hdt_qd + dVdt
    return tau, dEdt


if __name__ == "__main__":
    key = jax.random.PRNGKey(0)
    kp, kq, kqd, kqdd = jax.random.split(key, 4)

    params = init_params(kp)

    B = 8
    q = jax.random.normal(kq, (B, N_DOF), jnp.float32)
    qd = jax.random.normal(kqd, (B, N_DOF), jnp.float32)
    qdd = jax.random.normal(kqdd, (B, N_DOF), jnp.float32)

    tau, dedt = delan_forward(q, qd, qdd, params)
    jax.block_until_ready((tau, dedt))

    tau_ref, dedt_ref = delan_reference(q, qd, qdd, params)
    # Tolerances cover bf16 rounding of the pre-combined derivative weights
    # (Wcomb) used for the fused derivative matmul; the value heads and all
    # ReLU / ReLUDer sign decisions are computed in f32 and match exactly.
    np.testing.assert_allclose(np.asarray(tau), np.asarray(tau_ref),
                               rtol=1e-2, atol=5e-3)
    np.testing.assert_allclose(np.asarray(dedt), np.asarray(dedt_ref),
                               rtol=1e-2, atol=5e-3)

    assert tau.shape == (B, N_DOF) and dedt.shape == (B,)
    print("KERNEL_OK")
</pallas_src>

<mosaic_0001>
module attributes {stable_mosaic.version = 11 : i64} {
  func.func @delan_kernel(%arg0: i32, %arg1: memref<8x512xf32, #tpu.memory_space<vmem>>, %arg2: memref<128x8xf32, #tpu.memory_space<vmem>>, %arg3: memref<128x1xf32, #tpu.memory_space<vmem>>, %arg4: memref<8x128xf32, #tpu.memory_space<vmem>>, %arg5: memref<8x1xf32, #tpu.memory_space<vmem>>, %arg6: memref<8x128xbf16, #tpu.memory_space<vmem>>, %arg7: memref<3x512xf32, #tpu.memory_space<vmem>>) attributes {dimension_semantics = [#tpu.dimension_semantics<parallel>], iteration_bounds = array<i64: 1>, scalar_prefetch = 0 : i64, scratch_operands = 0 : i64, tpu.core_type = #tpu.core_type<tc>, window_params = [{transform_indices = @transform_0, window_bounds = array<i64: 8, 512>}, {pipeline_mode = #tpu.pipeline_mode<synchronous>, transform_indices = @transform_1, window_bounds = array<i64: 128, 8>}, {pipeline_mode = #tpu.pipeline_mode<synchronous>, transform_indices = @transform_2, window_bounds = array<i64: 128, 1>}, {pipeline_mode = #tpu.pipeline_mode<synchronous>, transform_indices = @transform_3, window_bounds = array<i64: 8, 128>}, {pipeline_mode = #tpu.pipeline_mode<synchronous>, transform_indices = @transform_4, window_bounds = array<i64: 8, 1>}, {pipeline_mode = #tpu.pipeline_mode<synchronous>, transform_indices = @transform_5, window_bounds = array<i64: 8, 128>}, {transform_indices = @transform_6, window_bounds = array<i64: 3, 512>}]} {
    %c0 = arith.constant 0 : index
    %c0_0 = arith.constant 0 : index
    %0 = vector.load %arg1[%c0, %c0_0] : memref<8x512xf32, #tpu.memory_space<vmem>>, vector<8x512xf32>
    %1 = vector.extract_strided_slice %0 {offsets = [2, 0], sizes = [1, 512], strides = [1, 1]} : vector<8x512xf32> to vector<1x512xf32>
    %2 = vector.extract_strided_slice %0 {offsets = [3, 0], sizes = [1, 512], strides = [1, 1]} : vector<8x512xf32> to vector<1x512xf32>
    %3 = vector.extract_strided_slice %0 {offsets = [4, 0], sizes = [1, 512], strides = [1, 1]} : vector<8x512xf32> to vector<1x512xf32>
    %4 = vector.extract_strided_slice %0 {offsets = [5, 0], sizes = [1, 512], strides = [1, 1]} : vector<8x512xf32> to vector<1x512xf32>
    %c0_1 = arith.constant 0 : index
    %c0_2 = arith.constant 0 : index
    %5 = vector.load %arg2[%c0_1, %c0_2] : memref<128x8xf32, #tpu.memory_space<vmem>>, vector<128x8xf32>
    %cst = arith.constant dense<0.000000e+00> : vector<128x512xf32>
    %6 = tpu.matmul %5, %0, %cst {dimension_numbers = #tpu.dot_dimension_numbers<[1], [0], [0], [1], [0, 0, 1, 1], [], []>} : vector<128x8xf32>, vector<8x512xf32>, vector<128x512xf32> -> vector<128x512xf32>
    %c0_3 = arith.constant 0 : index
    %c0_4 = arith.constant 0 : index
    %7 = vector.load %arg3[%c0_3, %c0_4] : memref<128x1xf32, #tpu.memory_space<vmem>>, vector<128x1xf32>
    %8 = vector.broadcast %7 : vector<128x1xf32> to vector<128x512xf32>
    %9 = arith.addf %6, %8 : vector<128x512xf32>
    %cst_5 = arith.constant 0.000000e+00 : f32
    %10 = vector.broadcast %cst_5 : f32 to vector<128x512xf32>
    %11 = arith.maximumf %9, %10 : vector<128x512xf32>
    %cst_6 = arith.constant 0.000000e+00 : f32
    %12 = vector.broadcast %cst_6 : f32 to vector<128x512xf32>
    %13 = arith.cmpf ogt, %9, %12 : vector<128x512xf32>
    %cst_7 = arith.constant 1.000000e+00 : f32
    %cst_8 = arith.constant 0.000000e+00 : f32
    %14 = vector.broadcast %cst_7 : f32 to vector<128x512xf32>
    %15 = vector.broadcast %cst_8 : f32 to vector<128x512xf32>
    %16 = arith.select %13, %14, %15 : vector<128x512xi1>, vector<128x512xf32>
    %17 = arith.truncf %16 : vector<128x512xf32> to vector<128x512xbf16>
    %c0_9 = arith.constant 0 : index
    %c0_10 = arith.constant 0 : index
    %18 = vector.load %arg4[%c0_9, %c0_10] : memref<8x128xf32, #tpu.memory_space<vmem>>, vector<8x128xf32>
    %cst_11 = arith.constant dense<0.000000e+00> : vector<8x512xf32>
    %19 = tpu.matmul %18, %11, %cst_11 {dimension_numbers = #tpu.dot_dimension_numbers<[1], [0], [0], [1], [0, 0, 1, 1], [], []>} : vector<8x128xf32>, vector<128x512xf32>, vector<8x512xf32> -> vector<8x512xf32>
    %c0_12 = arith.constant 0 : index
    %c0_13 = arith.constant 0 : index
    %20 = vector.load %arg5[%c0_12, %c0_13] : memref<8x1xf32, #tpu.memory_space<vmem>>, vector<8x1xf32>
    %21 = vector.broadcast %20 : vector<8x1xf32> to vector<8x512xf32>
    %22 = arith.addf %19, %21 : vector<8x512xf32>
    %c0_14 = arith.constant 0 : index
    %c0_15 = arith.constant 0 : index
    %23 = vector.load %arg6[%c0_14, %c0_15] : memref<8x128xbf16, #tpu.memory_space<vmem>>, vector<8x128xbf16>
    %cst_16 = arith.constant dense<0.000000e+00> : vector<8x512xf32>
    %24 = tpu.matmul %23, %17, %cst_16 {dimension_numbers = #tpu.dot_dimension_numbers<[1], [0], [0], [1], [0, 0, 1, 1], [], []>} : vector<8x128xbf16>, vector<128x512xbf16>, vector<8x512xf32> -> vector<8x512xf32>
    %25 = vector.extract_strided_slice %22 {offsets = [0, 0], sizes = [1, 512], strides = [1, 1]} : vector<8x512xf32> to vector<1x512xf32>
    %26 = vector.extract_strided_slice %22 {offsets = [1, 0], sizes = [2, 512], strides = [1, 1]} : vector<8x512xf32> to vector<2x512xf32>
    %cst_17 = arith.constant 0.000000e+00 : f32
    %27 = vector.broadcast %cst_17 : f32 to vector<2x512xf32>
    %28 = arith.maximumf %26, %27 : vector<2x512xf32>
    %29 = vector.extract_strided_slice %28 {offsets = [0, 0], sizes = [1, 512], strides = [1, 1]} : vector<2x512xf32> to vector<1x512xf32>
    %30 = vector.extract_strided_slice %28 {offsets = [1, 0], sizes = [1, 512], strides = [1, 1]} : vector<2x512xf32> to vector<1x512xf32>
    %cst_18 = arith.constant 1.000000e+00 : f32
    %31 = vector.broadcast %cst_18 : f32 to vector<1x512xf32>
    %32 = vector.extract_strided_slice %26 {offsets = [0, 0], sizes = [1, 512], strides = [1, 1]} : vector<2x512xf32> to vector<1x512xf32>
    %cst_19 = arith.constant 0.000000e+00 : f32
    %33 = vector.broadcast %cst_19 : f32 to vector<1x512xf32>
    %34 = arith.cmpf ogt, %32, %33 : vector<1x512xf32>
    %35 = arith.extui %34 : vector<1x512xi1> to vector<1x512xi32>
    %36 = arith.sitofp %35 : vector<1x512xi32> to vector<1x512xf32>
    %37 = vector.extract_strided_slice %26 {offsets = [1, 0], sizes = [1, 512], strides = [1, 1]} : vector<2x512xf32> to vector<1x512xf32>
    %cst_20 = arith.constant 0.000000e+00 : f32
    %38 = vector.broadcast %cst_20 : f32 to vector<1x512xf32>
    %39 = arith.cmpf ogt, %37, %38 : vector<1x512xf32>
    %40 = arith.extui %39 : vector<1x512xi1> to vector<1x512xi32>
    %41 = arith.sitofp %40 : vector<1x512xi32> to vector<1x512xf32>
    %42 = tpu.concatenate %36, %31, %41, %31 in 0 : vector<1x512xf32>, vector<1x512xf32>, vector<1x512xf32>, vector<1x512xf32> -> vector<4x512xf32>
    %43 = vector.extract_strided_slice %24 {offsets = [0, 0], sizes = [4, 512], strides = [1, 1]} : vector<8x512xf32> to vector<4x512xf32>
    %44 = arith.mulf %43, %42 : vector<4x512xf32>
    %45 = vector.extract_strided_slice %24 {offsets = [4, 0], sizes = [4, 512], strides = [1, 1]} : vector<8x512xf32> to vector<4x512xf32>
    %46 = arith.mulf %45, %42 : vector<4x512xf32>
    %47 = vector.extract_strided_slice %44 {offsets = [3, 0], sizes = [1, 512], strides = [1, 1]} : vector<4x512xf32> to vector<1x512xf32>
    %48 = vector.extract_strided_slice %46 {offsets = [3, 0], sizes = [1, 512], strides = [1, 1]} : vector<4x512xf32> to vector<1x512xf32>
    %49 = vector.broadcast %1 : vector<1x512xf32> to vector<4x512xf32>
    %50 = arith.mulf %44, %49 : vector<4x512xf32>
    %51 = vector.broadcast %2 : vector<1x512xf32> to vector<4x512xf32>
    %52 = arith.mulf %46, %51 : vector<4x512xf32>
    %53 = arith.addf %50, %52 : vector<4x512xf32>
    %54 = vector.extract_strided_slice %53 {offsets = [0, 0], sizes = [1, 512], strides = [1, 1]} : vector<4x512xf32> to vector<1x512xf32>
    %55 = vector.extract_strided_slice %53 {offsets = [1, 0], sizes = [1, 512], strides = [1, 1]} : vector<4x512xf32> to vector<1x512xf32>
    %56 = vector.extract_strided_slice %53 {offsets = [2, 0], sizes = [1, 512], strides = [1, 1]} : vector<4x512xf32> to vector<1x512xf32>
    %57 = vector.extract_strided_slice %53 {offsets = [3, 0], sizes = [1, 512], strides = [1, 1]} : vector<4x512xf32> to vector<1x512xf32>
    %58 = arith.mulf %29, %1 : vector<1x512xf32>
    %59 = arith.mulf %25, %2 : vector<1x512xf32>
    %60 = arith.addf %58, %59 : vector<1x512xf32>
    %61 = arith.mulf %30, %2 : vector<1x512xf32>
    %62 = arith.mulf %54, %1 : vector<1x512xf32>
    %63 = arith.mulf %55, %2 : vector<1x512xf32>
    %64 = arith.addf %62, %63 : vector<1x512xf32>
    %65 = arith.mulf %56, %2 : vector<1x512xf32>
    %66 = arith.mulf %29, %3 : vector<1x512xf32>
    %67 = arith.mulf %25, %4 : vector<1x512xf32>
    %68 = arith.addf %66, %67 : vector<1x512xf32>
    %69 = arith.mulf %30, %4 : vector<1x512xf32>
    %70 = arith.mulf %29, %68 : vector<1x512xf32>
    %cst_21 = arith.constant 9.99999974E-6 : f32
    %71 = vector.broadcast %cst_21 : f32 to vector<1x512xf32>
    %72 = arith.mulf %71, %3 : vector<1x512xf32>
    %73 = arith.addf %70, %72 : vector<1x512xf32>
    %74 = arith.mulf %25, %68 : vector<1x512xf32>
    %75 = arith.mulf %30, %69 : vector<1x512xf32>
    %76 = arith.addf %74, %75 : vector<1x512xf32>
    %cst_22 = arith.constant 9.99999974E-6 : f32
    %77 = vector.broadcast %cst_22 : f32 to vector<1x512xf32>
    %78 = arith.mulf %77, %4 : vector<1x512xf32>
    %79 = arith.addf %76, %78 : vector<1x512xf32>
    %80 = arith.mulf %29, %64 : vector<1x512xf32>
    %81 = arith.mulf %54, %60 : vector<1x512xf32>
    %82 = arith.addf %80, %81 : vector<1x512xf32>
    %83 = arith.mulf %25, %64 : vector<1x512xf32>
    %84 = arith.mulf %30, %65 : vector<1x512xf32>
    %85 = arith.addf %83, %84 : vector<1x512xf32>
    %86 = arith.mulf %55, %60 : vector<1x512xf32>
    %87 = arith.addf %85, %86 : vector<1x512xf32>
    %88 = arith.mulf %56, %61 : vector<1x512xf32>
    %89 = arith.addf %87, %88 : vector<1x512xf32>
    %90 = arith.mulf %2, %61 : vector<1x512xf32>
    %91 = vector.extract_strided_slice %44 {offsets = [0, 0], sizes = [1, 512], strides = [1, 1]} : vector<4x512xf32> to vector<1x512xf32>
    %92 = arith.mulf %91, %1 : vector<1x512xf32>
    %93 = vector.extract_strided_slice %44 {offsets = [1, 0], sizes = [1, 512], strides = [1, 1]} : vector<4x512xf32> to vector<1x512xf32>
    %94 = arith.mulf %93, %2 : vector<1x512xf32>
    %95 = arith.addf %92, %94 : vector<1x512xf32>
    %96 = vector.extract_strided_slice %46 {offsets = [0, 0], sizes = [1, 512], strides = [1, 1]} : vector<4x512xf32> to vector<1x512xf32>
    %97 = arith.mulf %96, %1 : vector<1x512xf32>
    %98 = vector.extract_strided_slice %46 {offsets = [1, 0], sizes = [1, 512], strides = [1, 1]} : vector<4x512xf32> to vector<1x512xf32>
    %99 = arith.mulf %98, %2 : vector<1x512xf32>
    %100 = arith.addf %97, %99 : vector<1x512xf32>
    %101 = arith.mulf %95, %60 : vector<1x512xf32>
    %102 = vector.extract_strided_slice %44 {offsets = [2, 0], sizes = [1, 512], strides = [1, 1]} : vector<4x512xf32> to vector<1x512xf32>
    %103 = arith.mulf %102, %90 : vector<1x512xf32>
    %104 = arith.addf %101, %103 : vector<1x512xf32>
    %cst_23 = arith.constant 2.000000e+00 : f32
    %105 = vector.broadcast %cst_23 : f32 to vector<1x512xf32>
    %106 = arith.mulf %105, %104 : vector<1x512xf32>
    %107 = arith.mulf %100, %60 : vector<1x512xf32>
    %108 = vector.extract_strided_slice %46 {offsets = [2, 0], sizes = [1, 512], strides = [1, 1]} : vector<4x512xf32> to vector<1x512xf32>
    %109 = arith.mulf %108, %90 : vector<1x512xf32>
    %110 = arith.addf %107, %109 : vector<1x512xf32>
    %cst_24 = arith.constant 2.000000e+00 : f32
    %111 = vector.broadcast %cst_24 : f32 to vector<1x512xf32>
    %112 = arith.mulf %111, %110 : vector<1x512xf32>
    %cst_25 = arith.constant 5.000000e-01 : f32
    %113 = vector.broadcast %cst_25 : f32 to vector<1x512xf32>
    %114 = arith.mulf %113, %106 : vector<1x512xf32>
    %115 = arith.subf %82, %114 : vector<1x512xf32>
    %116 = arith.addf %73, %115 : vector<1x512xf32>
    %117 = arith.addf %116, %47 : vector<1x512xf32>
    %c0_26 = arith.constant 0 : index
    %c0_27 = arith.constant 0 : index
    %118 = vector.load %arg7[%c0_26, %c0_27] : memref<3x512xf32, #tpu.memory_space<vmem>>, vector<1x512xf32>
    tpu.vector_store %arg7[%c0_26, %c0_27], %117 {strides = array<i32>} : memref<3x512xf32, #tpu.memory_space<vmem>>, vector<1x512xf32>,
    %cst_28 = arith.constant 5.000000e-01 : f32
    %119 = vector.broadcast %cst_28 : f32 to vector<1x512xf32>
    %120 = arith.mulf %119, %112 : vector<1x512xf32>
    %121 = arith.subf %89, %120 : vector<1x512xf32>
    %122 = arith.addf %79, %121 : vector<1x512xf32>
    %123 = arith.addf %122, %48 : vector<1x512xf32>
    %c1 = arith.constant 1 : index
    %c0_29 = arith.constant 0 : index
    %124 = vector.load %arg7[%c1, %c0_29] : memref<3x512xf32, #tpu.memory_space<vmem>>, vector<1x512xf32>
    tpu.vector_store %arg7[%c1, %c0_29], %123 {strides = array<i32>} : memref<3x512xf32, #tpu.memory_space<vmem>>, vector<1x512xf32>,
    %125 = arith.mulf %1, %73 : vector<1x512xf32>
    %126 = arith.mulf %2, %79 : vector<1x512xf32>
    %127 = arith.addf %125, %126 : vector<1x512xf32>
    %128 = arith.mulf %1, %82 : vector<1x512xf32>
    %129 = arith.mulf %2, %89 : vector<1x512xf32>
    %130 = arith.addf %128, %129 : vector<1x512xf32>
    %cst_30 = arith.constant 5.000000e-01 : f32
    %131 = vector.broadcast %cst_30 : f32 to vector<1x512xf32>
    %132 = arith.mulf %131, %130 : vector<1x512xf32>
    %133 = arith.addf %127, %132 : vector<1x512xf32>
    %134 = arith.addf %133, %57 : vector<1x512xf32>
    %c2 = arith.constant 2 : index
    %c0_31 = arith.constant 0 : index
    %135 = vector.load %arg7[%c2, %c0_31] : memref<3x512xf32, #tpu.memory_space<vmem>>, vector<1x512xf32>
    tpu.vector_store %arg7[%c2, %c0_31], %134 {strides = array<i32>} : memref<3x512xf32, #tpu.memory_space<vmem>>, vector<1x512xf32>,
    return
  }
  func.func @transform_0(%arg0: i32) -> (i32, i32) {
    %c0_i32 = arith.constant 0 : i32
    %c0_i32_0 = arith.constant 0 : i32
    return %c0_i32, %arg0 : i32, i32
  }
  func.func @transform_1(%arg0: i32) -> (i32, i32) {
    %c0_i32 = arith.constant 0 : i32
    %c0_i32_0 = arith.constant 0 : i32
    %c0_i32_1 = arith.constant 0 : i32
    return %c0_i32, %c0_i32_0 : i32, i32
  }
  func.func @transform_2(%arg0: i32) -> (i32, i32) {
    %c0_i32 = arith.constant 0 : i32
    %c0_i32_0 = arith.constant 0 : i32
    %c0_i32_1 = arith.constant 0 : i32
    return %c0_i32, %c0_i32_0 : i32, i32
  }
  func.func @transform_3(%arg0: i32) -> (i32, i32) {
    %c0_i32 = arith.constant 0 : i32
    %c0_i32_0 = arith.constant 0 : i32
    %c0_i32_1 = arith.constant 0 : i32
    return %c0_i32, %c0_i32_0 : i32, i32
  }
  func.func @transform_4(%arg0: i32) -> (i32, i32) {
    %c0_i32 = arith.constant 0 : i32
    %c0_i32_0 = arith.constant 0 : i32
    %c0_i32_1 = arith.constant 0 : i32
    return %c0_i32, %c0_i32_0 : i32, i32
  }
  func.func @transform_5(%arg0: i32) -> (i32, i32) {
    %c0_i32 = arith.constant 0 : i32
    %c0_i32_0 = arith.constant 0 : i32
    %c0_i32_1 = arith.constant 0 : i32
    return %c0_i32, %c0_i32_0 : i32, i32
  }
  func.func @transform_6(%arg0: i32) -> (i32, i32) {
    %c0_i32 = arith.constant 0 : i32
    %c0_i32_0 = arith.constant 0 : i32
    return %c0_i32, %arg0 : i32, i32
  }
}

</mosaic_0001>

<llo_original>
// kernel: delan_forward.1
$region0: #{delan_forward.1}
  #allocation0 [shape = 'u32[]', space=smem, size = 0x4, offset = 0x4, fixed_abs, tag = 'smem constant byte address 0x4 - core index']
  #allocation1 [shape = 'u32[72,128]{1,0:T(1,128)}', space=vmem, size = 0x9000, scoped, tag = 'internal scratch']
  %s0 = inlined_call_operand.vmem [shape: f32[8,512], index: 0, kind: input, shape index: {}]
  %s1 = inlined_call_operand.vmem [shape: f32[128,8], index: 1, kind: input, shape index: {}]
  %s2 = inlined_call_operand.vmem [shape: f32[128,1], index: 2, kind: input, shape index: {}]
  %s3 = inlined_call_operand.vmem [shape: f32[8,128], index: 3, kind: input, shape index: {}]
  %s4 = inlined_call_operand.vmem [shape: f32[8,1], index: 4, kind: input, shape index: {}]
  %s5 = inlined_call_operand.vmem [shape: bf16[8,128], index: 5, kind: input, shape index: {}]
  %s6 = inlined_call_operand.vmem [shape: f32[3,512], index: 6, kind: output, shape index: {}]
  %s7 = sld [smem:[#allocation0]]
  $region34: #{delan_forward.1} parent=0
    _
  %s9 = ssub.s32 1, %s7
  %s10 = scalar_select 0, %s9, %s7
  // Predicated region
  $region2: #{delan_forward.1} parent=0 // pred_check
    _
  $region3: #{delan_forward.1} parent=0 // pred_check_branch
    %12 = sbr.rel (0) target = $region5
  $region4: #{delan_forward.1} parent=0 // pred_region
    _
  $region5: #{delan_forward.1} parent=0 // pred_fallthru
    _
  // Predicated region
  $region6: #{delan_forward.1} parent=0 // pred_check
    _
  $region7: #{delan_forward.1} parent=0 // pred_check_branch
    %14 = sbr.rel (0) target = $region9
  $region8: #{delan_forward.1} parent=0 // pred_region
    _
  $region9: #{delan_forward.1} parent=0 // pred_fallthru
    _
  // Predicated region
  $region10: #{delan_forward.1} parent=0 // pred_check
    _
  $region11: #{delan_forward.1} parent=0 // pred_check_branch
    %16 = sbr.rel (0) target = $region13
  $region12: #{delan_forward.1} parent=0 // pred_region
    _
  $region13: #{delan_forward.1} parent=0 // pred_fallthru
    _
  // Predicated region
  $region14: #{delan_forward.1} parent=0 // pred_check
    _
  $region15: #{delan_forward.1} parent=0 // pred_check_branch
    %18 = sbr.rel (0) target = $region17
  $region16: #{delan_forward.1} parent=0 // pred_region
    _
  $region17: #{delan_forward.1} parent=0 // pred_fallthru
    _
  // Predicated region
  $region18: #{delan_forward.1} parent=0 // pred_check
    _
  $region19: #{delan_forward.1} parent=0 // pred_check_branch
    %20 = sbr.rel (0) target = $region21
  $region20: #{delan_forward.1} parent=0 // pred_region
    _
  $region21: #{delan_forward.1} parent=0 // pred_fallthru
    _
  // Predicated region
  $region22: #{delan_forward.1} parent=0 // pred_check
    _
  $region23: #{delan_forward.1} parent=0 // pred_check_branch
    %22 = sbr.rel (0) target = $region25
  $region24: #{delan_forward.1} parent=0 // pred_region
    _
  $region25: #{delan_forward.1} parent=0 // pred_fallthru
    _
  %v23 = vld [vmem:[%s0] sm:$0xff]
  %v24 = vld [vmem:[%s0 + $0x8] sm:$0xff]
  %v25 = vld [vmem:[%s0 + $0x10] sm:$0xff]
  %v26 = vld [vmem:[%s0 + $0x18] sm:$0xff]
  %v27 = vld [vmem:[%s1] sm:$0xff]
  %v28 = vld [vmem:[%s1 + $0x8] sm:$0xff]
  %v29 = vld [vmem:[%s1 + $0x10] sm:$0xff]
  %v30 = vld [vmem:[%s1 + $0x18] sm:$0xff]
  %v31 = vld [vmem:[%s1 + $0x20] sm:$0xff]
  %v32 = vld [vmem:[%s1 + $0x28] sm:$0xff]
  %v33 = vld [vmem:[%s1 + $0x30] sm:$0xff]
  %v34 = vld [vmem:[%s1 + $0x38] sm:$0xff]
  %v35 = vld [vmem:[%s1 + $0x40] sm:$0xff]
  %v36 = vld [vmem:[%s1 + $0x48] sm:$0xff]
  %v37 = vld [vmem:[%s1 + $0x50] sm:$0xff]
  %v38 = vld [vmem:[%s1 + $0x58] sm:$0xff]
  %v39 = vld [vmem:[%s1 + $0x60] sm:$0xff]
  %v40 = vld [vmem:[%s1 + $0x68] sm:$0xff]
  %v41 = vld [vmem:[%s1 + $0x70] sm:$0xff]
  %v42 = vld [vmem:[%s1 + $0x78] sm:$0xff]
  %v43 = vld [vmem:[%s2] sm:$0xff]
  %v44 = vld [vmem:[%s2 + $0x8] sm:$0xff]
  %v45 = vld [vmem:[%s2 + $0x10] sm:$0xff]
  %v46 = vld [vmem:[%s2 + $0x18] sm:$0xff]
  %v47 = vld [vmem:[%s2 + $0x20] sm:$0xff]
  %v48 = vld [vmem:[%s2 + $0x28] sm:$0xff]
  %v49 = vld [vmem:[%s2 + $0x30] sm:$0xff]
  %v50 = vld [vmem:[%s2 + $0x38] sm:$0xff]
  %v51 = vld [vmem:[%s2 + $0x40] sm:$0xff]
  %v52 = vld [vmem:[%s2 + $0x48] sm:$0xff]
  %v53 = vld [vmem:[%s2 + $0x50] sm:$0xff]
  %v54 = vld [vmem:[%s2 + $0x58] sm:$0xff]
  %v55 = vld [vmem:[%s2 + $0x60] sm:$0xff]
  %v56 = vld [vmem:[%s2 + $0x68] sm:$0xff]
  %v57 = vld [vmem:[%s2 + $0x70] sm:$0xff]
  %v58 = vld [vmem:[%s2 + $0x78] sm:$0xff]
  %60 = vset.pattern.permute.xlu0 0
  %61 = vperm.xlu0 %60, %v43
  %v62 = vpop.permute.xlu0 %61
  %65 = vset.pattern.permute.xlu0 0
  %66 = vperm.xlu0 %65, %v44
  %v67 = vpop.permute.xlu0 %66
  %70 = vset.pattern.permute.xlu0 0
  %71 = vperm.xlu0 %70, %v45
  %v72 = vpop.permute.xlu0 %71
  %75 = vset.pattern.permute.xlu0 0
  %76 = vperm.xlu0 %75, %v46
  %v77 = vpop.permute.xlu0 %76
  %80 = vset.pattern.permute.xlu0 0
  %81 = vperm.xlu0 %80, %v47
  %v82 = vpop.permute.xlu0 %81
  %85 = vset.pattern.permute.xlu0 0
  %86 = vperm.xlu0 %85, %v48
  %v87 = vpop.permute.xlu0 %86
  %90 = vset.pattern.permute.xlu0 0
  %91 = vperm.xlu0 %90, %v49
  %v92 = vpop.permute.xlu0 %91
  %95 = vset.pattern.permute.xlu0 0
  %96 = vperm.xlu0 %95, %v50
  %v97 = vpop.permute.xlu0 %96
  %100 = vset.pattern.permute.xlu0 0
  %101 = vperm.xlu0 %100, %v51
  %v102 = vpop.permute.xlu0 %101
  %105 = vset.pattern.permute.xlu0 0
  %106 = vperm.xlu0 %105, %v52
  %v107 = vpop.permute.xlu0 %106
  %110 = vset.pattern.permute.xlu0 0
  %111 = vperm.xlu0 %110, %v53
  %v112 = vpop.permute.xlu0 %111
  %115 = vset.pattern.permute.xlu0 0
  %116 = vperm.xlu0 %115, %v54
  %v117 = vpop.permute.xlu0 %116
  %120 = vset.pattern.permute.xlu0 0
  %121 = vperm.xlu0 %120, %v55
  %v122 = vpop.permute.xlu0 %121
  %125 = vset.pattern.permute.xlu0 0
  %126 = vperm.xlu0 %125, %v56
  %v127 = vpop.permute.xlu0 %126
  %130 = vset.pattern.permute.xlu0 0
  %131 = vperm.xlu0 %130, %v57
  %v132 = vpop.permute.xlu0 %131
  %135 = vset.pattern.permute.xlu0 0
  %136 = vperm.xlu0 %135, %v58
  %v137 = vpop.permute.xlu0 %136
  %vm139 = vcmask 64512
  %v141 = vsel %vm139, %v27, 0
  %v144 = vsel %vm139, %v28, 0
  %v147 = vsel %vm139, %v29, 0
  %v150 = vsel %vm139, %v30, 0
  %v153 = vsel %vm139, %v31, 0
  %v156 = vsel %vm139, %v32, 0
  %v159 = vsel %vm139, %v33, 0
  %v162 = vsel %vm139, %v34, 0
  %v165 = vsel %vm139, %v35, 0
  %v168 = vsel %vm139, %v36, 0
  %v171 = vsel %vm139, %v37, 0
  %v174 = vsel %vm139, %v38, 0
  %v177 = vsel %vm139, %v39, 0
  %v180 = vsel %vm139, %v40, 0
  %v183 = vsel %vm139, %v41, 0
  %v186 = vsel %vm139, %v42, 0
  %188 = vmatpush.msra.mxu0 0.0
  %189 = vmatpush.msra.mxu0 0.0
  %190 = vmatpush.msra.mxu0 0.0
  %191 = vmatpush.msra.mxu0 0.0
  %192 = vmatpush.msra.mxu0 0.0
  %193 = vmatpush.msra.mxu0 0.0
  %194 = vmatpush.msra.mxu0 0.0
  %195 = vmatpush.msra.mxu0 0.0
  %196 = vmatpush.msra.mxu0 0.0
  %197 = vmatpush.msra.mxu0 0.0
  %198 = vmatpush.msra.mxu0 0.0
  %199 = vmatpush.msra.mxu0 0.0
  %200 = vmatpush.msra.mxu0 0.0
  %201 = vmatpush.msra.mxu0 0.0
  %202 = vmatpush.msra.mxu0 0.0
  %203 = vmatpush.msra.mxu0 %v23
  %204 = vmatmul.f32.gmra.mxu0 %v141
  %v205 = vpop.f32.mrf.mxu0
  %v206 = vadd.f32 %v62, %v205
  %207 = vmatmul.f32.gmra.mxu0 %v144
  %v208 = vpop.f32.mrf.mxu0
  %v209 = vadd.f32 %v67, %v208
  %210 = vmatmul.f32.gmra.mxu0 %v147
  %v211 = vpop.f32.mrf.mxu0
  %v212 = vadd.f32 %v72, %v211
  %213 = vmatmul.f32.gmra.mxu0 %v150
  %v214 = vpop.f32.mrf.mxu0
  %v215 = vadd.f32 %v77, %v214
  %216 = vmatmul.f32.gmra.mxu0 %v153
  %v217 = vpop.f32.mrf.mxu0
  %v218 = vadd.f32 %v82, %v217
  %219 = vmatmul.f32.gmra.mxu0 %v156
  %v220 = vpop.f32.mrf.mxu0
  %v221 = vadd.f32 %v87, %v220
  %222 = vmatmul.f32.gmra.mxu0 %v159
  %v223 = vpop.f32.mrf.mxu0
  %v224 = vadd.f32 %v92, %v223
  %225 = vmatmul.f32.gmra.mxu0 %v162
  %v226 = vpop.f32.mrf.mxu0
  %v227 = vadd.f32 %v97, %v226
  %228 = vmatmul.f32.gmra.mxu0 %v165
  %v229 = vpop.f32.mrf.mxu0
  %v230 = vadd.f32 %v102, %v229
  %231 = vmatmul.f32.gmra.mxu0 %v168
  %v232 = vpop.f32.mrf.mxu0
  %v233 = vadd.f32 %v107, %v232
  %234 = vmatmul.f32.gmra.mxu0 %v171
  %v235 = vpop.f32.mrf.mxu0
  %v236 = vadd.f32 %v112, %v235
  %237 = vmatmul.f32.gmra.mxu0 %v174
  %v238 = vpop.f32.mrf.mxu0
  %v239 = vadd.f32 %v117, %v238
  %240 = vmatmul.f32.gmra.mxu0 %v177
  %v241 = vpop.f32.mrf.mxu0
  %v242 = vadd.f32 %v122, %v241
  %243 = vmatmul.f32.gmra.mxu0 %v180
  %v244 = vpop.f32.mrf.mxu0
  %v245 = vadd.f32 %v127, %v244
  %246 = vmatmul.f32.gmra.mxu0 %v183
  %v247 = vpop.f32.mrf.mxu0
  %v248 = vadd.f32 %v132, %v247
  %249 = vmatmul.f32.gmra.mxu0 %v186
  %v250 = vpop.f32.mrf.mxu0
  %v251 = vadd.f32 %v137, %v250
  %252 = vdwg.mxu0
  %253 = vmatpush.msra.mxu0 0.0
  %254 = vmatpush.msra.mxu0 0.0
  %255 = vmatpush.msra.mxu0 0.0
  %256 = vmatpush.msra.mxu0 0.0
  %257 = vmatpush.msra.mxu0 0.0
  %258 = vmatpush.msra.mxu0 0.0
  %259 = vmatpush.msra.mxu0 0.0
  %260 = vmatpush.msra.mxu0 0.0
  %261 = vmatpush.msra.mxu0 0.0
  %262 = vmatpush.msra.mxu0 0.0
  %263 = vmatpush.msra.mxu0 0.0
  %264 = vmatpush.msra.mxu0 0.0
  %265 = vmatpush.msra.mxu0 0.0
  %266 = vmatpush.msra.mxu0 0.0
  %267 = vmatpush.msra.mxu0 0.0
  %268 = vmatpush.msra.mxu0 %v24
  %269 = vmatmul.f32.gmra.mxu0 %v141
  %v270 = vpop.f32.mrf.mxu0
  %v271 = vadd.f32 %v62, %v270
  %272 = vmatmul.f32.gmra.mxu0 %v144
  %v273 = vpop.f32.mrf.mxu0
  %v274 = vadd.f32 %v67, %v273
  %275 = vmatmul.f32.gmra.mxu0 %v147
  %v276 = vpop.f32.mrf.mxu0
  %v277 = vadd.f32 %v72, %v276
  %278 = vmatmul.f32.gmra.mxu0 %v150
  %v279 = vpop.f32.mrf.mxu0
  %v280 = vadd.f32 %v77, %v279
  %281 = vmatmul.f32.gmra.mxu0 %v153
  %v282 = vpop.f32.mrf.mxu0
  %v283 = vadd.f32 %v82, %v282
  %284 = vmatmul.f32.gmra.mxu0 %v156
  %v285 = vpop.f32.mrf.mxu0
  %v286 = vadd.f32 %v87, %v285
  %287 = vmatmul.f32.gmra.mxu0 %v159
  %v288 = vpop.f32.mrf.mxu0
  %v289 = vadd.f32 %v92, %v288
  %290 = vmatmul.f32.gmra.mxu0 %v162
  %v291 = vpop.f32.mrf.mxu0
  %v292 = vadd.f32 %v97, %v291
  %293 = vmatmul.f32.gmra.mxu0 %v165
  %v294 = vpop.f32.mrf.mxu0
  %v295 = vadd.f32 %v102, %v294
  %296 = vmatmul.f32.gmra.mxu0 %v168
  %v297 = vpop.f32.mrf.mxu0
  %v298 = vadd.f32 %v107, %v297
  %299 = vmatmul.f32.gmra.mxu0 %v171
  %v300 = vpop.f32.mrf.mxu0
  %v301 = vadd.f32 %v112, %v300
  %302 = vmatmul.f32.gmra.mxu0 %v174
  %v303 = vpop.f32.mrf.mxu0
  %v304 = vadd.f32 %v117, %v303
  %305 = vmatmul.f32.gmra.mxu0 %v177
  %v306 = vpop.f32.mrf.mxu0
  %v307 = vadd.f32 %v122, %v306
  %308 = vmatmul.f32.gmra.mxu0 %v180
  %v309 = vpop.f32.mrf.mxu0
  %v310 = vadd.f32 %v127, %v309
  %311 = vmatmul.f32.gmra.mxu0 %v183
  %v312 = vpop.f32.mrf.mxu0
  %v313 = vadd.f32 %v132, %v312
  %314 = vmatmul.f32.gmra.mxu0 %v186
  %v315 = vpop.f32.mrf.mxu0
  %v316 = vadd.f32 %v137, %v315
  %317 = vdwg.mxu0
  %318 = vmatpush.msra.mxu0 0.0
  %319 = vmatpush.msra.mxu0 0.0
  %320 = vmatpush.msra.mxu0 0.0
  %321 = vmatpush.msra.mxu0 0.0
  %322 = vmatpush.msra.mxu0 0.0
  %323 = vmatpush.msra.mxu0 0.0
  %324 = vmatpush.msra.mxu0 0.0
  %325 = vmatpush.msra.mxu0 0.0
  %326 = vmatpush.msra.mxu0 0.0
  %327 = vmatpush.msra.mxu0 0.0
  %328 = vmatpush.msra.mxu0 0.0
  %329 = vmatpush.msra.mxu0 0.0
  %330 = vmatpush.msra.mxu0 0.0
  %331 = vmatpush.msra.mxu0 0.0
  %332 = vmatpush.msra.mxu0 0.0
  %333 = vmatpush.msra.mxu0 %v25
  %334 = vmatmul.f32.gmra.mxu0 %v141
  %v335 = vpop.f32.mrf.mxu0
  %v336 = vadd.f32 %v62, %v335
  %337 = vmatmul.f32.gmra.mxu0 %v144
  %v338 = vpop.f32.mrf.mxu0
  %v339 = vadd.f32 %v67, %v338
  %340 = vmatmul.f32.gmra.mxu0 %v147
  %v341 = vpop.f32.mrf.mxu0
  %v342 = vadd.f32 %v72, %v341
  %343 = vmatmul.f32.gmra.mxu0 %v150
  %v344 = vpop.f32.mrf.mxu0
  %v345 = vadd.f32 %v77, %v344
  %346 = vmatmul.f32.gmra.mxu0 %v153
  %v347 = vpop.f32.mrf.mxu0
  %v348 = vadd.f32 %v82, %v347
  %349 = vmatmul.f32.gmra.mxu0 %v156
  %v350 = vpop.f32.mrf.mxu0
  %v351 = vadd.f32 %v87, %v350
  %352 = vmatmul.f32.gmra.mxu0 %v159
  %v353 = vpop.f32.mrf.mxu0
  %v354 = vadd.f32 %v92, %v353
  %355 = vmatmul.f32.gmra.mxu0 %v162
  %v356 = vpop.f32.mrf.mxu0
  %v357 = vadd.f32 %v97, %v356
  %358 = vmatmul.f32.gmra.mxu0 %v165
  %v359 = vpop.f32.mrf.mxu0
  %v360 = vadd.f32 %v102, %v359
  %361 = vmatmul.f32.gmra.mxu0 %v168
  %v362 = vpop.f32.mrf.mxu0
  %v363 = vadd.f32 %v107, %v362
  %364 = vmatmul.f32.gmra.mxu0 %v171
  %v365 = vpop.f32.mrf.mxu0
  %v366 = vadd.f32 %v112, %v365
  %367 = vmatmul.f32.gmra.mxu0 %v174
  %v368 = vpop.f32.mrf.mxu0
  %v369 = vadd.f32 %v117, %v368
  %370 = vmatmul.f32.gmra.mxu0 %v177
  %v371 = vpop.f32.mrf.mxu0
  %v372 = vadd.f32 %v122, %v371
  %373 = vmatmul.f32.gmra.mxu0 %v180
  %v374 = vpop.f32.mrf.mxu0
  %v375 = vadd.f32 %v127, %v374
  %376 = vmatmul.f32.gmra.mxu0 %v183
  %v377 = vpop.f32.mrf.mxu0
  %v378 = vadd.f32 %v132, %v377
  %379 = vmatmul.f32.gmra.mxu0 %v186
  %v380 = vpop.f32.mrf.mxu0
  %v381 = vadd.f32 %v137, %v380
  %382 = vdwg.mxu0
  %383 = vmatpush.msra.mxu0 0.0
  %384 = vmatpush.msra.mxu0 0.0
  %385 = vmatpush.msra.mxu0 0.0
  %386 = vmatpush.msra.mxu0 0.0
  %387 = vmatpush.msra.mxu0 0.0
  %388 = vmatpush.msra.mxu0 0.0
  %389 = vmatpush.msra.mxu0 0.0
  %390 = vmatpush.msra.mxu0 0.0
  %391 = vmatpush.msra.mxu0 0.0
  %392 = vmatpush.msra.mxu0 0.0
  %393 = vmatpush.msra.mxu0 0.0
  %394 = vmatpush.msra.mxu0 0.0
  %395 = vmatpush.msra.mxu0 0.0
  %396 = vmatpush.msra.mxu0 0.0
  %397 = vmatpush.msra.mxu0 0.0
  %398 = vmatpush.msra.mxu0 %v26
  %399 = vmatmul.f32.gmra.mxu0 %v141
  %v400 = vpop.f32.mrf.mxu0
  %v401 = vadd.f32 %v62, %v400
  %402 = vmatmul.f32.gmra.mxu0 %v144
  %v403 = vpop.f32.mrf.mxu0
  %v404 = vadd.f32 %v67, %v403
  %405 = vmatmul.f32.gmra.mxu0 %v147
  %v406 = vpop.f32.mrf.mxu0
  %v407 = vadd.f32 %v72, %v406
  %408 = vmatmul.f32.gmra.mxu0 %v150
  %v409 = vpop.f32.mrf.mxu0
  %v410 = vadd.f32 %v77, %v409
  %411 = vmatmul.f32.gmra.mxu0 %v153
  %v412 = vpop.f32.mrf.mxu0
  %v413 = vadd.f32 %v82, %v412
  %414 = vmatmul.f32.gmra.mxu0 %v156
  %v415 = vpop.f32.mrf.mxu0
  %v416 = vadd.f32 %v87, %v415
  %417 = vmatmul.f32.gmra.mxu0 %v159
  %v418 = vpop.f32.mrf.mxu0
  %v419 = vadd.f32 %v92, %v418
  %420 = vmatmul.f32.gmra.mxu0 %v162
  %v421 = vpop.f32.mrf.mxu0
  %v422 = vadd.f32 %v97, %v421
  %423 = vmatmul.f32.gmra.mxu0 %v165
  %v424 = vpop.f32.mrf.mxu0
  %v425 = vadd.f32 %v102, %v424
  %426 = vmatmul.f32.gmra.mxu0 %v168
  %v427 = vpop.f32.mrf.mxu0
  %v428 = vadd.f32 %v107, %v427
  %429 = vmatmul.f32.gmra.mxu0 %v171
  %v430 = vpop.f32.mrf.mxu0
  %v431 = vadd.f32 %v112, %v430
  %432 = vmatmul.f32.gmra.mxu0 %v174
  %v433 = vpop.f32.mrf.mxu0
  %v434 = vadd.f32 %v117, %v433
  %435 = vmatmul.f32.gmra.mxu0 %v177
  %v436 = vpop.f32.mrf.mxu0
  %v437 = vadd.f32 %v122, %v436
  %438 = vmatmul.f32.gmra.mxu0 %v180
  %v439 = vpop.f32.mrf.mxu0
  %v440 = vadd.f32 %v127, %v439
  %441 = vmatmul.f32.gmra.mxu0 %v183
  %v442 = vpop.f32.mrf.mxu0
  %v443 = vadd.f32 %v132, %v442
  %444 = vmatmul.f32.gmra.mxu0 %v186
  %v445 = vpop.f32.mrf.mxu0
  %v446 = vadd.f32 %v137, %v445
  %447 = vdwg.mxu0
  %v448 = vmax.f32 %v206, 0.0
  %v449 = vmax.f32 %v271, 0.0
  %v450 = vmax.f32 %v336, 0.0
  %v451 = vmax.f32 %v401, 0.0
  %v452 = vmax.f32 %v209, 0.0
  %v453 = vmax.f32 %v274, 0.0
  %v454 = vmax.f32 %v339, 0.0
  %v455 = vmax.f32 %v404, 0.0
  %v456 = vmax.f32 %v212, 0.0
  %v457 = vmax.f32 %v277, 0.0
  %v458 = vmax.f32 %v342, 0.0
  %v459 = vmax.f32 %v407, 0.0
  %v460 = vmax.f32 %v215, 0.0
  %v461 = vmax.f32 %v280, 0.0
  %v462 = vmax.f32 %v345, 0.0
  %v463 = vmax.f32 %v410, 0.0
  %v464 = vmax.f32 %v218, 0.0
  %v465 = vmax.f32 %v283, 0.0
  %v466 = vmax.f32 %v348, 0.0
  %v467 = vmax.f32 %v413, 0.0
  %v468 = vmax.f32 %v221, 0.0
  %v469 = vmax.f32 %v286, 0.0
  %v470 = vmax.f32 %v351, 0.0
  %v471 = vmax.f32 %v416, 0.0
  %v472 = vmax.f32 %v224, 0.0
  %v473 = vmax.f32 %v289, 0.0
  %v474 = vmax.f32 %v354, 0.0
  %v475 = vmax.f32 %v419, 0.0
  %v476 = vmax.f32 %v227, 0.0
  %v477 = vmax.f32 %v292, 0.0
  %v478 = vmax.f32 %v357, 0.0
  %v479 = vmax.f32 %v422, 0.0
  %v480 = vmax.f32 %v230, 0.0
  %v481 = vmax.f32 %v295, 0.0
  %v482 = vmax.f32 %v360, 0.0
  %v483 = vmax.f32 %v425, 0.0
  %v484 = vmax.f32 %v233, 0.0
  %v485 = vmax.f32 %v298, 0.0
  %v486 = vmax.f32 %v363, 0.0
  %v487 = vmax.f32 %v428, 0.0
  %v488 = vmax.f32 %v236, 0.0
  %v489 = vmax.f32 %v301, 0.0
  %v490 = vmax.f32 %v366, 0.0
  %v491 = vmax.f32 %v431, 0.0
  %v492 = vmax.f32 %v239, 0.0
  %v493 = vmax.f32 %v304, 0.0
  %v494 = vmax.f32 %v369, 0.0
  %v495 = vmax.f32 %v434, 0.0
  %v496 = vmax.f32 %v242, 0.0
  %v497 = vmax.f32 %v307, 0.0
  %v498 = vmax.f32 %v372, 0.0
  %v499 = vmax.f32 %v437, 0.0
  %v500 = vmax.f32 %v245, 0.0
  %v501 = vmax.f32 %v310, 0.0
  %v502 = vmax.f32 %v375, 0.0
  %v503 = vmax.f32 %v440, 0.0
  %v504 = vmax.f32 %v248, 0.0
  %v505 = vmax.f32 %v313, 0.0
  %v506 = vmax.f32 %v378, 0.0
  %v507 = vmax.f32 %v443, 0.0
  %v508 = vmax.f32 %v251, 0.0
  %v509 = vmax.f32 %v316, 0.0
  %v510 = vmax.f32 %v381, 0.0
  %v511 = vmax.f32 %v446, 0.0
  %vm512 = vcmp.gt.f32.partialorder %v206, 0.0
  %vm513 = vcmp.gt.f32.partialorder %v271, 0.0
  %vm514 = vcmp.gt.f32.partialorder %v336, 0.0
  %vm515 = vcmp.gt.f32.partialorder %v401, 0.0
  %vm516 = vcmp.gt.f32.partialorder %v209, 0.0
  %vm517 = vcmp.gt.f32.partialorder %v274, 0.0
  %vm518 = vcmp.gt.f32.partialorder %v339, 0.0
  %vm519 = vcmp.gt.f32.partialorder %v404, 0.0
  %vm520 = vcmp.gt.f32.partialorder %v212, 0.0
  %vm521 = vcmp.gt.f32.partialorder %v277, 0.0
  %vm522 = vcmp.gt.f32.partialorder %v342, 0.0
  %vm523 = vcmp.gt.f32.partialorder %v407, 0.0
  %vm524 = vcmp.gt.f32.partialorder %v215, 0.0
  %vm525 = vcmp.gt.f32.partialorder %v280, 0.0
  %vm526 = vcmp.gt.f32.partialorder %v345, 0.0
  %vm527 = vcmp.gt.f32.partialorder %v410, 0.0
  %vm528 = vcmp.gt.f32.partialorder %v218, 0.0
  %vm529 = vcmp.gt.f32.partialorder %v283, 0.0
  %vm530 = vcmp.gt.f32.partialorder %v348, 0.0
  %vm531 = vcmp.gt.f32.partialorder %v413, 0.0
  %vm532 = vcmp.gt.f32.partialorder %v221, 0.0
  %vm533 = vcmp.gt.f32.partialorder %v286, 0.0
  %vm534 = vcmp.gt.f32.partialorder %v351, 0.0
  %vm535 = vcmp.gt.f32.partialorder %v416, 0.0
  %vm536 = vcmp.gt.f32.partialorder %v224, 0.0
  %vm537 = vcmp.gt.f32.partialorder %v289, 0.0
  %vm538 = vcmp.gt.f32.partialorder %v354, 0.0
  %vm539 = vcmp.gt.f32.partialorder %v419, 0.0
  %vm540 = vcmp.gt.f32.partialorder %v227, 0.0
  %vm541 = vcmp.gt.f32.partialorder %v292, 0.0
  %vm542 = vcmp.gt.f32.partialorder %v357, 0.0
  %vm543 = vcmp.gt.f32.partialorder %v422, 0.0
  %vm544 = vcmp.gt.f32.partialorder %v230, 0.0
  %vm545 = vcmp.gt.f32.partialorder %v295, 0.0
  %vm546 = vcmp.gt.f32.partialorder %v360, 0.0
  %vm547 = vcmp.gt.f32.partialorder %v425, 0.0
  %vm548 = vcmp.gt.f32.partialorder %v233, 0.0
  %vm549 = vcmp.gt.f32.partialorder %v298, 0.0
  %vm550 = vcmp.gt.f32.partialorder %v363, 0.0
  %vm551 = vcmp.gt.f32.partialorder %v428, 0.0
  %vm552 = vcmp.gt.f32.partialorder %v236, 0.0
  %vm553 = vcmp.gt.f32.partialorder %v301, 0.0
  %vm554 = vcmp.gt.f32.partialorder %v366, 0.0
  %vm555 = vcmp.gt.f32.partialorder %v431, 0.0
  %vm556 = vcmp.gt.f32.partialorder %v239, 0.0
  %vm557 = vcmp.gt.f32.partialorder %v304, 0.0
  %vm558 = vcmp.gt.f32.partialorder %v369, 0.0
  %vm559 = vcmp.gt.f32.partialorder %v434, 0.0
  %vm560 = vcmp.gt.f32.partialorder %v242, 0.0
  %vm561 = vcmp.gt.f32.partialorder %v307, 0.0
  %vm562 = vcmp.gt.f32.partialorder %v372, 0.0
  %vm563 = vcmp.gt.f32.partialorder %v437, 0.0
  %vm564 = vcmp.gt.f32.partialorder %v245, 0.0
  %vm565 = vcmp.gt.f32.partialorder %v310, 0.0
  %vm566 = vcmp.gt.f32.partialorder %v375, 0.0
  %vm567 = vcmp.gt.f32.partialorder %v440, 0.0
  %vm568 = vcmp.gt.f32.partialorder %v248, 0.0
  %vm569 = vcmp.gt.f32.partialorder %v313, 0.0
  %vm570 = vcmp.gt.f32.partialorder %v378, 0.0
  %vm571 = vcmp.gt.f32.partialorder %v443, 0.0
  %vm572 = vcmp.gt.f32.partialorder %v251, 0.0
  %vm573 = vcmp.gt.f32.partialorder %v316, 0.0
  %vm574 = vcmp.gt.f32.partialorder %v381, 0.0
  %vm575 = vcmp.gt.f32.partialorder %v446, 0.0
  %v576 = vsel %vm512, 1.0, 0.0
  %v577 = vsel %vm513, 1.0, 0.0
  %v578 = vsel %vm514, 1.0, 0.0
  %v579 = vsel %vm515, 1.0, 0.0
  %v580 = vsel %vm516, 1.0, 0.0
  %v581 = vsel %vm517, 1.0, 0.0
  %v582 = vsel %vm518, 1.0, 0.0
  %v583 = vsel %vm519, 1.0, 0.0
  %v584 = vsel %vm520, 1.0, 0.0
  %v585 = vsel %vm521, 1.0, 0.0
  %v586 = vsel %vm522, 1.0, 0.0
  %v587 = vsel %vm523, 1.0, 0.0
  %v588 = vsel %vm524, 1.0, 0.0
  %v589 = vsel %vm525, 1.0, 0.0
  %v590 = vsel %vm526, 1.0, 0.0
  %v591 = vsel %vm527, 1.0, 0.0
  %v592 = vsel %vm528, 1.0, 0.0
  %v593 = vsel %vm529, 1.0, 0.0
  %v594 = vsel %vm530, 1.0, 0.0
  %v595 = vsel %vm531, 1.0, 0.0
  %v596 = vsel %vm532, 1.0, 0.0
  %v597 = vsel %vm533, 1.0, 0.0
  %v598 = vsel %vm534, 1.0, 0.0
  %v599 = vsel %vm535, 1.0, 0.0
  %v600 = vsel %vm536, 1.0, 0.0
  %v601 = vsel %vm537, 1.0, 0.0
  %v602 = vsel %vm538, 1.0, 0.0
  %v603 = vsel %vm539, 1.0, 0.0
  %v604 = vsel %vm540, 1.0, 0.0
  %v605 = vsel %vm541, 1.0, 0.0
  %v606 = vsel %vm542, 1.0, 0.0
  %v607 = vsel %vm543, 1.0, 0.0
  %v608 = vsel %vm544, 1.0, 0.0
  %v609 = vsel %vm545, 1.0, 0.0
  %v610 = vsel %vm546, 1.0, 0.0
  %v611 = vsel %vm547, 1.0, 0.0
  %v612 = vsel %vm548, 1.0, 0.0
  %v613 = vsel %vm549, 1.0, 0.0
  %v614 = vsel %vm550, 1.0, 0.0
  %v615 = vsel %vm551, 1.0, 0.0
  %v616 = vsel %vm552, 1.0, 0.0
  %v617 = vsel %vm553, 1.0, 0.0
  %v618 = vsel %vm554, 1.0, 0.0
  %v619 = vsel %vm555, 1.0, 0.0
  %v620 = vsel %vm556, 1.0, 0.0
  %v621 = vsel %vm557, 1.0, 0.0
  %v622 = vsel %vm558, 1.0, 0.0
  %v623 = vsel %vm559, 1.0, 0.0
  %v624 = vsel %vm560, 1.0, 0.0
  %v625 = vsel %vm561, 1.0, 0.0
  %v626 = vsel %vm562, 1.0, 0.0
  %v627 = vsel %vm563, 1.0, 0.0
  %v628 = vsel %vm564, 1.0, 0.0
  %v629 = vsel %vm565, 1.0, 0.0
  %v630 = vsel %vm566, 1.0, 0.0
  %v631 = vsel %vm567, 1.0, 0.0
  %v632 = vsel %vm568, 1.0, 0.0
  %v633 = vsel %vm569, 1.0, 0.0
  %v634 = vsel %vm570, 1.0, 0.0
  %v635 = vsel %vm571, 1.0, 0.0
  %v636 = vsel %vm572, 1.0, 0.0
  %v637 = vsel %vm573, 1.0, 0.0
  %v638 = vsel %vm574, 1.0, 0.0
  %v639 = vsel %vm575, 1.0, 0.0
  %v640 = vpack.c.bf16 %v580, %v576
  %v641 = vpack.c.bf16 %v581, %v577
  %v642 = vpack.c.bf16 %v582, %v578
  %v643 = vpack.c.bf16 %v583, %v579
  %v644 = vpack.c.bf16 %v588, %v584
  %v645 = vpack.c.bf16 %v589, %v585
  %v646 = vpack.c.bf16 %v590, %v586
  %v647 = vpack.c.bf16 %v591, %v587
  %v648 = vpack.c.bf16 %v596, %v592
  %v649 = vpack.c.bf16 %v597, %v593
  %v650 = vpack.c.bf16 %v598, %v594
  %v651 = vpack.c.bf16 %v599, %v595
  %v652 = vpack.c.bf16 %v604, %v600
  %v653 = vpack.c.bf16 %v605, %v601
  %v654 = vpack.c.bf16 %v606, %v602
  %v655 = vpack.c.bf16 %v607, %v603
  %v656 = vpack.c.bf16 %v612, %v608
  %v657 = vpack.c.bf16 %v613, %v609
  %v658 = vpack.c.bf16 %v614, %v610
  %v659 = vpack.c.bf16 %v615, %v611
  %v660 = vpack.c.bf16 %v620, %v616
  %v661 = vpack.c.bf16 %v621, %v617
  %v662 = vpack.c.bf16 %v622, %v618
  %v663 = vpack.c.bf16 %v623, %v619
  %v664 = vpack.c.bf16 %v628, %v624
  %v665 = vpack.c.bf16 %v629, %v625
  %v666 = vpack.c.bf16 %v630, %v626
  %v667 = vpack.c.bf16 %v631, %v627
  %v668 = vpack.c.bf16 %v636, %v632
  %v669 = vpack.c.bf16 %v637, %v633
  %v670 = vpack.c.bf16 %v638, %v634
  %v671 = vpack.c.bf16 %v639, %v635
  %v672 = vld [vmem:[%s3] sm:$0xff]
  %v673 = vld [vmem:[%s4] sm:$0xff]
  %675 = vset.pattern.permute.xlu0 0
  %676 = vperm.xlu0 %675, %v673
  %v677 = vpop.permute.xlu0 %676
  %679 = vmatpush.msra.mxu0 %v508
  %680 = vmatpush.msra.mxu0 %v504
  %681 = vmatpush.msra.mxu0 %v500
  %682 = vmatpush.msra.mxu0 %v496
  %683 = vmatpush.msra.mxu0 %v492
  %684 = vmatpush.msra.mxu0 %v488
  %685 = vmatpush.msra.mxu0 %v484
  %686 = vmatpush.msra.mxu0 %v480
  %687 = vmatpush.msra.mxu0 %v476
  %688 = vmatpush.msra.mxu0 %v472
  %689 = vmatpush.msra.mxu0 %v468
  %690 = vmatpush.msra.mxu0 %v464
  %691 = vmatpush.msra.mxu0 %v460
  %692 = vmatpush.msra.mxu0 %v456
  %693 = vmatpush.msra.mxu0 %v452
  %694 = vmatpush.msra.mxu0 %v448
  %695 = vmatmul.f32.gmra.mxu0 %v672
  %v696 = vpop.f32.mrf.mxu0
  %v697 = vadd.f32 %v677, %v696
  %698 = vdwg.mxu0
  %699 = vmatpush.msra.mxu0 %v509
  %700 = vmatpush.msra.mxu0 %v505
  %701 = vmatpush.msra.mxu0 %v501
  %702 = vmatpush.msra.mxu0 %v497
  %703 = vmatpush.msra.mxu0 %v493
  %704 = vmatpush.msra.mxu0 %v489
  %705 = vmatpush.msra.mxu0 %v485
  %706 = vmatpush.msra.mxu0 %v481
  %707 = vmatpush.msra.mxu0 %v477
  %708 = vmatpush.msra.mxu0 %v473
  %709 = vmatpush.msra.mxu0 %v469
  %710 = vmatpush.msra.mxu0 %v465
  %711 = vmatpush.msra.mxu0 %v461
  %712 = vmatpush.msra.mxu0 %v457
  %713 = vmatpush.msra.mxu0 %v453
  %714 = vmatpush.msra.mxu0 %v449
  %715 = vmatmul.f32.gmra.mxu0 %v672
  %v716 = vpop.f32.mrf.mxu0
  %v717 = vadd.f32 %v677, %v716
  %718 = vdwg.mxu0
  %719 = vmatpush.msra.mxu0 %v510
  %720 = vmatpush.msra.mxu0 %v506
  %721 = vmatpush.msra.mxu0 %v502
  %722 = vmatpush.msra.mxu0 %v498
  %723 = vmatpush.msra.mxu0 %v494
  %724 = vmatpush.msra.mxu0 %v490
  %725 = vmatpush.msra.mxu0 %v486
  %726 = vmatpush.msra.mxu0 %v482
  %727 = vmatpush.msra.mxu0 %v478
  %728 = vmatpush.msra.mxu0 %v474
  %729 = vmatpush.msra.mxu0 %v470
  %730 = vmatpush.msra.mxu0 %v466
  %731 = vmatpush.msra.mxu0 %v462
  %732 = vmatpush.msra.mxu0 %v458
  %733 = vmatpush.msra.mxu0 %v454
  %734 = vmatpush.msra.mxu0 %v450
  %735 = vmatmul.f32.gmra.mxu0 %v672
  %v736 = vpop.f32.mrf.mxu0
  %v737 = vadd.f32 %v677, %v736
  %738 = vdwg.mxu0
  %739 = vmatpush.msra.mxu0 %v511
  %740 = vmatpush.msra.mxu0 %v507
  %741 = vmatpush.msra.mxu0 %v503
  %742 = vmatpush.msra.mxu0 %v499
  %743 = vmatpush.msra.mxu0 %v495
  %744 = vmatpush.msra.mxu0 %v491
  %745 = vmatpush.msra.mxu0 %v487
  %746 = vmatpush.msra.mxu0 %v483
  %747 = vmatpush.msra.mxu0 %v479
  %748 = vmatpush.msra.mxu0 %v475
  %749 = vmatpush.msra.mxu0 %v471
  %750 = vmatpush.msra.mxu0 %v467
  %751 = vmatpush.msra.mxu0 %v463
  %752 = vmatpush.msra.mxu0 %v459
  %753 = vmatpush.msra.mxu0 %v455
  %754 = vmatpush.msra.mxu0 %v451
  %755 = vmatmul.f32.gmra.mxu0 %v672
  %v756 = vpop.f32.mrf.mxu0
  %v757 = vadd.f32 %v677, %v756
  %758 = vdwg.mxu0
  %v759 = vld [vmem:[%s5] sm:$0xf]
  %760 = vmatpush.bf16.msra.mxu0 %v668
  %761 = vmatpush.bf16.msra.mxu0 %v664
  %762 = vmatpush.bf16.msra.mxu0 %v660
  %763 = vmatpush.bf16.msra.mxu0 %v656
  %764 = vmatpush.bf16.msra.mxu0 %v652
  %765 = vmatpush.bf16.msra.mxu0 %v648
  %766 = vmatpush.bf16.msra.mxu0 %v644
  %767 = vmatpush.bf16.msra.mxu0 %v640
  %768 = vmatmul.bf16.gmra.mxu0 %v759
  %v769 = vpop.f32.mrf.mxu0
  %v770 = vadd.f32 0.0, %v769
  %v771 = vpop.f32.mrf.mxu0
  %772 = vdwg.mxu0
  %773 = vmatpush.bf16.msra.mxu0 %v669
  %774 = vmatpush.bf16.msra.mxu0 %v665
  %775 = vmatpush.bf16.msra.mxu0 %v661
  %776 = vmatpush.bf16.msra.mxu0 %v657
  %777 = vmatpush.bf16.msra.mxu0 %v653
  %778 = vmatpush.bf16.msra.mxu0 %v649
  %779 = vmatpush.bf16.msra.mxu0 %v645
  %780 = vmatpush.bf16.msra.mxu0 %v641
  %781 = vmatmul.bf16.gmra.mxu0 %v759
  %v782 = vpop.f32.mrf.mxu0
  %v783 = vadd.f32 0.0, %v782
  %v784 = vpop.f32.mrf.mxu0
  %785 = vdwg.mxu0
  %786 = vmatpush.bf16.msra.mxu0 %v670
  %787 = vmatpush.bf16.msra.mxu0 %v666
  %788 = vmatpush.bf16.msra.mxu0 %v662
  %789 = vmatpush.bf16.msra.mxu0 %v658
  %790 = vmatpush.bf16.msra.mxu0 %v654
  %791 = vmatpush.bf16.msra.mxu0 %v650
  %792 = vmatpush.bf16.msra.mxu0 %v646
  %793 = vmatpush.bf16.msra.mxu0 %v642
  %794 = vmatmul.bf16.gmra.mxu0 %v759
  %v795 = vpop.f32.mrf.mxu0
  %v796 = vadd.f32 0.0, %v795
  %v797 = vpop.f32.mrf.mxu0
  %798 = vdwg.mxu0
  %799 = vmatpush.bf16.msra.mxu0 %v671
  %800 = vmatpush.bf16.msra.mxu0 %v667
  %801 = vmatpush.bf16.msra.mxu0 %v663
  %802 = vmatpush.bf16.msra.mxu0 %v659
  %803 = vmatpush.bf16.msra.mxu0 %v655
  %804 = vmatpush.bf16.msra.mxu0 %v651
  %805 = vmatpush.bf16.msra.mxu0 %v647
  %806 = vmatpush.bf16.msra.mxu0 %v643
  %807 = vmatmul.bf16.gmra.mxu0 %v759
  %v808 = vpop.f32.mrf.mxu0
  %v809 = vadd.f32 0.0, %v808
  %v810 = vpop.f32.mrf.mxu0
  %811 = vdwg.mxu0
  %v812 = vmax.f32 %v697, 0.0
  %v813 = vmax.f32 %v717, 0.0
  %v814 = vmax.f32 %v737, 0.0
  %v815 = vmax.f32 %v757, 0.0
  %vm816 = vcmp.gt.f32.partialorder %v697, 0.0
  %vm817 = vcmp.gt.f32.partialorder %v717, 0.0
  %vm818 = vcmp.gt.f32.partialorder %v737, 0.0
  %vm819 = vcmp.gt.f32.partialorder %v757, 0.0
  %v820 = vsel %vm816, 1, 0
  %v821 = vsel %vm817, 1, 0
  %v822 = vsel %vm818, 1, 0
  %v823 = vsel %vm819, 1, 0
  %v824 = vcvt.s32.f32 %v820
  %v825 = vcvt.s32.f32 %v821
  %v826 = vcvt.s32.f32 %v822
  %v827 = vcvt.s32.f32 %v823
  %v832 = vrot.slane %v824, 1
  %v833 = vrot.slane %v825, 1
  %v834 = vrot.slane %v826, 1
  %v835 = vrot.slane %v827, 1
  %vm840 = vcmask 1040384
  %v841 = vsel %vm840, %v832, 1.0
  %v842 = vsel %vm840, %v833, 1.0
  %v843 = vsel %vm840, %v834, 1.0
  %v844 = vsel %vm840, %v835, 1.0
  %vm845 = vcmask 1041408
  %v846 = vsel %vm845, %v841, %v824
  %v847 = vsel %vm845, %v842, %v825
  %v848 = vsel %vm845, %v843, %v826
  %v849 = vsel %vm845, %v844, %v827
  %vm850 = vcmask 1042432
  %v851 = vsel %vm850, %v846, 1.0
  %v852 = vsel %vm850, %v847, 1.0
  %v853 = vsel %vm850, %v848, 1.0
  %v854 = vsel %vm850, %v849, 1.0
  %v855 = vmul.f32 %v770, %v851
  %v856 = vmul.f32 %v783, %v852
  %v857 = vmul.f32 %v796, %v853
  %v858 = vmul.f32 %v809, %v854
  %v863 = vrot.slane %v851, 4
  %v864 = vrot.slane %v852, 4
  %v865 = vrot.slane %v853, 4
  %v866 = vrot.slane %v854, 4
  %v871 = vmul.f32 %v770, %v863
  %v872 = vmul.f32 %v783, %v864
  %v873 = vmul.f32 %v796, %v865
  %v874 = vmul.f32 %v809, %v866
  %v875 = vperm.slane %v23, 2
  %v876 = vperm.slane %v24, 2
  %v877 = vperm.slane %v25, 2
  %v878 = vperm.slane %v26, 2
  %v879 = vmul.f32 %v855, %v875
  %v880 = vmul.f32 %v856, %v876
  %v881 = vmul.f32 %v857, %v877
  %v882 = vmul.f32 %v858, %v878
  %v883 = vperm.slane %v23, 3
  %v884 = vperm.slane %v24, 3
  %v885 = vperm.slane %v25, 3
  %v886 = vperm.slane %v26, 3
  %v887 = vmul.f32 %v871, %v883
  %v888 = vmul.f32 %v872, %v884
  %v889 = vmul.f32 %v873, %v885
  %v890 = vmul.f32 %v874, %v886
  %v895 = vrot.slane %v887, 4
  %v896 = vrot.slane %v888, 4
  %v897 = vrot.slane %v889, 4
  %v898 = vrot.slane %v890, 4
  %v903 = vadd.f32 %v879, %v895
  %v904 = vadd.f32 %v880, %v896
  %v905 = vadd.f32 %v881, %v897
  %v906 = vadd.f32 %v882, %v898
  %v911 = vrot.slane %v23, 1
  %v912 = vrot.slane %v24, 1
  %v913 = vrot.slane %v25, 1
  %v914 = vrot.slane %v26, 1
  %v919 = vmul.f32 %v812, %v911
  %v920 = vmul.f32 %v813, %v912
  %v921 = vmul.f32 %v814, %v913
  %v922 = vmul.f32 %v815, %v914
  %v923 = vrot.slane %v23, 3
  %v924 = vrot.slane %v24, 3
  %v925 = vrot.slane %v25, 3
  %v926 = vrot.slane %v26, 3
  %v931 = vmul.f32 %v697, %v923
  %v932 = vmul.f32 %v717, %v924
  %v933 = vmul.f32 %v737, %v925
  %v934 = vmul.f32 %v757, %v926
  %v939 = vrot.slane %v931, 7
  %v940 = vrot.slane %v932, 7
  %v941 = vrot.slane %v933, 7
  %v942 = vrot.slane %v934, 7
  %v947 = vadd.f32 %v919, %v939
  %v948 = vadd.f32 %v920, %v940
  %v949 = vadd.f32 %v921, %v941
  %v950 = vadd.f32 %v922, %v942
  %v951 = vrot.slane %v23, 2
  %v952 = vrot.slane %v24, 2
  %v953 = vrot.slane %v25, 2
  %v954 = vrot.slane %v26, 2
  %v959 = vmul.f32 %v903, %v951
  %v960 = vmul.f32 %v904, %v952
  %v961 = vmul.f32 %v905, %v953
  %v962 = vmul.f32 %v906, %v954
  %v967 = vrot.slane %v959, 1
  %v968 = vrot.slane %v960, 1
  %v969 = vrot.slane %v961, 1
  %v970 = vrot.slane %v962, 1
  %v975 = vadd.f32 %v959, %v967
  %v976 = vadd.f32 %v960, %v968
  %v977 = vadd.f32 %v961, %v969
  %v978 = vadd.f32 %v962, %v970
  %v979 = vmul.f32 %v903, %v911
  %v980 = vmul.f32 %v904, %v912
  %v981 = vmul.f32 %v905, %v913
  %v982 = vmul.f32 %v906, %v914
  %v983 = vmul.f32 %v812, %v923
  %v984 = vmul.f32 %v813, %v924
  %v985 = vmul.f32 %v814, %v925
  %v986 = vmul.f32 %v815, %v926
  %v987 = vrot.slane %v23, 5
  %v988 = vrot.slane %v24, 5
  %v989 = vrot.slane %v25, 5
  %v990 = vrot.slane %v26, 5
  %v995 = vmul.f32 %v697, %v987
  %v996 = vmul.f32 %v717, %v988
  %v997 = vmul.f32 %v737, %v989
  %v998 = vmul.f32 %v757, %v990
  %v1003 = vrot.slane %v995, 7
  %v1004 = vrot.slane %v996, 7
  %v1005 = vrot.slane %v997, 7
  %v1006 = vrot.slane %v998, 7
  %v1011 = vadd.f32 %v983, %v1003
  %v1012 = vadd.f32 %v984, %v1004
  %v1013 = vadd.f32 %v985, %v1005
  %v1014 = vadd.f32 %v986, %v1006
  %v1015 = vmul.f32 %v812, %v1011
  %v1016 = vmul.f32 %v813, %v1012
  %v1017 = vmul.f32 %v814, %v1013
  %v1018 = vmul.f32 %v815, %v1014
  %v1019 = vmul.f32 %v23, 1e-05
  %v1020 = vmul.f32 %v24, 1e-05
  %v1021 = vmul.f32 %v25, 1e-05
  %v1022 = vmul.f32 %v26, 1e-05
  %v1027 = vrot.slane %v1019, 3
  %v1028 = vrot.slane %v1020, 3
  %v1029 = vrot.slane %v1021, 3
  %v1030 = vrot.slane %v1022, 3
  %v1035 = vadd.f32 %v1015, %v1027
  %v1036 = vadd.f32 %v1016, %v1028
  %v1037 = vadd.f32 %v1017, %v1029
  %v1038 = vadd.f32 %v1018, %v1030
  %v1043 = vrot.slane %v1011, 1
  %v1044 = vrot.slane %v1012, 1
  %v1045 = vrot.slane %v1013, 1
  %v1046 = vrot.slane %v1014, 1
  %v1051 = vmul.f32 %v697, %v1043
  %v1052 = vmul.f32 %v717, %v1044
  %v1053 = vmul.f32 %v737, %v1045
  %v1054 = vmul.f32 %v757, %v1046
  %v1055 = vmul.f32 %v812, %v983
  %v1056 = vmul.f32 %v813, %v984
  %v1057 = vmul.f32 %v814, %v985
  %v1058 = vmul.f32 %v815, %v986
  %v1063 = vrot.slane %v1055, 2
  %v1064 = vrot.slane %v1056, 2
  %v1065 = vrot.slane %v1057, 2
  %v1066 = vrot.slane %v1058, 2
  %v1071 = vadd.f32 %v1051, %v1063
  %v1072 = vadd.f32 %v1052, %v1064
  %v1073 = vadd.f32 %v1053, %v1065
  %v1074 = vadd.f32 %v1054, %v1066
  %v1075 = vrot.slane %v1019, 5
  %v1076 = vrot.slane %v1020, 5
  %v1077 = vrot.slane %v1021, 5
  %v1078 = vrot.slane %v1022, 5
  %v1083 = vadd.f32 %v1071, %v1075
  %v1084 = vadd.f32 %v1072, %v1076
  %v1085 = vadd.f32 %v1073, %v1077
  %v1086 = vadd.f32 %v1074, %v1078
  %v1091 = vrot.slane %v975, 7
  %v1092 = vrot.slane %v976, 7
  %v1093 = vrot.slane %v977, 7
  %v1094 = vrot.slane %v978, 7
  %v1099 = vmul.f32 %v812, %v1091
  %v1100 = vmul.f32 %v813, %v1092
  %v1101 = vmul.f32 %v814, %v1093
  %v1102 = vmul.f32 %v815, %v1094
  %v1107 = vrot.slane %v947, 1
  %v1108 = vrot.slane %v948, 1
  %v1109 = vrot.slane %v949, 1
  %v1110 = vrot.slane %v950, 1
  %v1115 = vmul.f32 %v903, %v1107
  %v1116 = vmul.f32 %v904, %v1108
  %v1117 = vmul.f32 %v905, %v1109
  %v1118 = vmul.f32 %v906, %v1110
  %v1123 = vrot.slane %v1115, 7
  %v1124 = vrot.slane %v1116, 7
  %v1125 = vrot.slane %v1117, 7
  %v1126 = vrot.slane %v1118, 7
  %v1131 = vadd.f32 %v1099, %v1123
  %v1132 = vadd.f32 %v1100, %v1124
  %v1133 = vadd.f32 %v1101, %v1125
  %v1134 = vadd.f32 %v1102, %v1126
  %v1135 = vmul.f32 %v697, %v975
  %v1136 = vmul.f32 %v717, %v976
  %v1137 = vmul.f32 %v737, %v977
  %v1138 = vmul.f32 %v757, %v978
  %v1139 = vmul.f32 %v812, %v979
  %v1140 = vmul.f32 %v813, %v980
  %v1141 = vmul.f32 %v814, %v981
  %v1142 = vmul.f32 %v815, %v982
  %v1147 = vrot.slane %v1139, 2
  %v1148 = vrot.slane %v1140, 2
  %v1149 = vrot.slane %v1141, 2
  %v1150 = vrot.slane %v1142, 2
  %v1155 = vadd.f32 %v1135, %v1147
  %v1156 = vadd.f32 %v1136, %v1148
  %v1157 = vadd.f32 %v1137, %v1149
  %v1158 = vadd.f32 %v1138, %v1150
  %v1159 = vmul.f32 %v903, %v947
  %v1160 = vmul.f32 %v904, %v948
  %v1161 = vmul.f32 %v905, %v949
  %v1162 = vmul.f32 %v906, %v950
  %v1167 = vrot.slane %v1159, 1
  %v1168 = vrot.slane %v1160, 1
  %v1169 = vrot.slane %v1161, 1
  %v1170 = vrot.slane %v1162, 1
  %v1175 = vadd.f32 %v1155, %v1167
  %v1176 = vadd.f32 %v1156, %v1168
  %v1177 = vadd.f32 %v1157, %v1169
  %v1178 = vadd.f32 %v1158, %v1170
  %v1179 = vmul.f32 %v903, %v919
  %v1180 = vmul.f32 %v904, %v920
  %v1181 = vmul.f32 %v905, %v921
  %v1182 = vmul.f32 %v906, %v922
  %v1187 = vrot.slane %v1179, 2
  %v1188 = vrot.slane %v1180, 2
  %v1189 = vrot.slane %v1181, 2
  %v1190 = vrot.slane %v1182, 2
  %v1195 = vadd.f32 %v1175, %v1187
  %v1196 = vadd.f32 %v1176, %v1188
  %v1197 = vadd.f32 %v1177, %v1189
  %v1198 = vadd.f32 %v1178, %v1190
  %v1203 = vrot.slane %v919, 7
  %v1204 = vrot.slane %v920, 7
  %v1205 = vrot.slane %v921, 7
  %v1206 = vrot.slane %v922, 7
  %v1211 = vmul.f32 %v23, %v1203
  %v1212 = vmul.f32 %v24, %v1204
  %v1213 = vmul.f32 %v25, %v1205
  %v1214 = vmul.f32 %v26, %v1206
  %v1215 = vmul.f32 %v855, %v951
  %v1216 = vmul.f32 %v856, %v952
  %v1217 = vmul.f32 %v857, %v953
  %v1218 = vmul.f32 %v858, %v954
  %v1223 = vrot.slane %v1215, 1
  %v1224 = vrot.slane %v1216, 1
  %v1225 = vrot.slane %v1217, 1
  %v1226 = vrot.slane %v1218, 1
  %v1231 = vadd.f32 %v1215, %v1223
  %v1232 = vadd.f32 %v1216, %v1224
  %v1233 = vadd.f32 %v1217, %v1225
  %v1234 = vadd.f32 %v1218, %v1226
  %v1235 = vrot.slane %v23, 6
  %v1236 = vrot.slane %v24, 6
  %v1237 = vrot.slane %v25, 6
  %v1238 = vrot.slane %v26, 6
  %v1243 = vmul.f32 %v871, %v1235
  %v1244 = vmul.f32 %v872, %v1236
  %v1245 = vmul.f32 %v873, %v1237
  %v1246 = vmul.f32 %v874, %v1238
  %v1251 = vrot.slane %v1243, 1
  %v1252 = vrot.slane %v1244, 1
  %v1253 = vrot.slane %v1245, 1
  %v1254 = vrot.slane %v1246, 1
  %v1259 = vadd.f32 %v1243, %v1251
  %v1260 = vadd.f32 %v1244, %v1252
  %v1261 = vadd.f32 %v1245, %v1253
  %v1262 = vadd.f32 %v1246, %v1254
  %v1263 = vmul.f32 %v1231, %v1107
  %v1264 = vmul.f32 %v1232, %v1108
  %v1265 = vmul.f32 %v1233, %v1109
  %v1266 = vmul.f32 %v1234, %v1110
  %v1271 = vrot.slane %v1211, 1
  %v1272 = vrot.slane %v1212, 1
  %v1273 = vrot.slane %v1213, 1
  %v1274 = vrot.slane %v1214, 1
  %v1279 = vmul.f32 %v855, %v1271
  %v1280 = vmul.f32 %v856, %v1272
  %v1281 = vmul.f32 %v857, %v1273
  %v1282 = vmul.f32 %v858, %v1274
  %v1287 = vrot.slane %v1279, 2
  %v1288 = vrot.slane %v1280, 2
  %v1289 = vrot.slane %v1281, 2
  %v1290 = vrot.slane %v1282, 2
  %v1295 = vadd.f32 %v1263, %v1287
  %v1296 = vadd.f32 %v1264, %v1288
  %v1297 = vadd.f32 %v1265, %v1289
  %v1298 = vadd.f32 %v1266, %v1290
  %v1299 = vmul.f32 %v1295, 2.0
  %v1300 = vmul.f32 %v1296, 2.0
  %v1301 = vmul.f32 %v1297, 2.0
  %v1302 = vmul.f32 %v1298, 2.0
  %v1303 = vrot.slane %v947, 5
  %v1304 = vrot.slane %v948, 5
  %v1305 = vrot.slane %v949, 5
  %v1306 = vrot.slane %v950, 5
  %v1311 = vmul.f32 %v1259, %v1303
  %v1312 = vmul.f32 %v1260, %v1304
  %v1313 = vmul.f32 %v1261, %v1305
  %v1314 = vmul.f32 %v1262, %v1306
  %v1315 = vrot.slane %v1211, 5
  %v1316 = vrot.slane %v1212, 5
  %v1317 = vrot.slane %v1213, 5
  %v1318 = vrot.slane %v1214, 5
  %v1323 = vmul.f32 %v871, %v1315
  %v1324 = vmul.f32 %v872, %v1316
  %v1325 = vmul.f32 %v873, %v1317
  %v1326 = vmul.f32 %v874, %v1318
  %v1331 = vrot.slane %v1323, 2
  %v1332 = vrot.slane %v1324, 2
  %v1333 = vrot.slane %v1325, 2
  %v1334 = vrot.slane %v1326, 2
  %v1339 = vadd.f32 %v1311, %v1331
  %v1340 = vadd.f32 %v1312, %v1332
  %v1341 = vadd.f32 %v1313, %v1333
  %v1342 = vadd.f32 %v1314, %v1334
  %v1343 = vmul.f32 %v1339, 2.0
  %v1344 = vmul.f32 %v1340, 2.0
  %v1345 = vmul.f32 %v1341, 2.0
  %v1346 = vmul.f32 %v1342, 2.0
  %v1347 = vmul.f32 %v1299, 0.5
  %v1348 = vmul.f32 %v1300, 0.5
  %v1349 = vmul.f32 %v1301, 0.5
  %v1350 = vmul.f32 %v1302, 0.5
  %v1355 = vrot.slane %v1347, 7
  %v1356 = vrot.slane %v1348, 7
  %v1357 = vrot.slane %v1349, 7
  %v1358 = vrot.slane %v1350, 7
  %v1363 = vsub.f32 %v1131, %v1355
  %v1364 = vsub.f32 %v1132, %v1356
  %v1365 = vsub.f32 %v1133, %v1357
  %v1366 = vsub.f32 %v1134, %v1358
  %v1367 = vadd.f32 %v1035, %v1363
  %v1368 = vadd.f32 %v1036, %v1364
  %v1369 = vadd.f32 %v1037, %v1365
  %v1370 = vadd.f32 %v1038, %v1366
  %v1375 = vrot.slane %v855, 2
  %v1376 = vrot.slane %v856, 2
  %v1377 = vrot.slane %v857, 2
  %v1378 = vrot.slane %v858, 2
  %v1383 = vadd.f32 %v1367, %v1375
  %v1384 = vadd.f32 %v1368, %v1376
  %v1385 = vadd.f32 %v1369, %v1377
  %v1386 = vadd.f32 %v1370, %v1378
  %1391 = vst [vmem:[#allocation1] sm:$0xff] %v1383
  %1392 = vst [vmem:[#allocation1 + $0x9] sm:$0xff] %v1384
  %1393 = vst [vmem:[#allocation1 + $0x12] sm:$0xff] %v1385
  %1394 = vst [vmem:[#allocation1 + $0x1b] sm:$0xff] %v1386
  %s1395 = scalar_lea.vmem [#allocation1], 1
  %v1396 = vld [vmem:[%s1395] ss:$9 sm:$0xff]
  %v1398 = vlaneseq
  %vm1399 = vcmp.ge.s32.totalorder %v1398, 0
  %vm1400 = vcmp.lt.s32.totalorder %v1398, 512
  %vm1401 = vmand %vm1399, %vm1400
  %1402 = vst.msk [vmem:[%s6] ss:$4 sm:$0xf] %vm1401, %v1396
  %v1403 = vmul.f32 %v1343, 0.5
  %v1404 = vmul.f32 %v1344, 0.5
  %v1405 = vmul.f32 %v1345, 0.5
  %v1406 = vmul.f32 %v1346, 0.5
  %v1411 = vrot.slane %v1403, 4
  %v1412 = vrot.slane %v1404, 4
  %v1413 = vrot.slane %v1405, 4
  %v1414 = vrot.slane %v1406, 4
  %v1419 = vsub.f32 %v1195, %v1411
  %v1420 = vsub.f32 %v1196, %v1412
  %v1421 = vsub.f32 %v1197, %v1413
  %v1422 = vsub.f32 %v1198, %v1414
  %v1423 = vadd.f32 %v1083, %v1419
  %v1424 = vadd.f32 %v1084, %v1420
  %v1425 = vadd.f32 %v1085, %v1421
  %v1426 = vadd.f32 %v1086, %v1422
  %v1431 = vrot.slane %v871, 7
  %v1432 = vrot.slane %v872, 7
  %v1433 = vrot.slane %v873, 7
  %v1434 = vrot.slane %v874, 7
  %v1439 = vadd.f32 %v1423, %v1431
  %v1440 = vadd.f32 %v1424, %v1432
  %v1441 = vadd.f32 %v1425, %v1433
  %v1442 = vadd.f32 %v1426, %v1434
  %v1447 = vrot.slane %v1440, 7
  %v1448 = vrot.slane %v1441, 6
  %v1449 = vrot.slane %v1442, 5
  %v1450 = vsel %vm840, %v1439, %v1447
  %vm1451 = vcmask 1042434
  %v1452 = vsel %vm1451, %v1448, %v1449
  %v1453 = vsel %vm845, %v1450, %v1452
  %s1455 = scalar_lea.vmem %s6, 1
  %1456 = vst.msk [vmem:[%s1455] ss:$4 sm:$0xf] %vm1401, %v1453
  %v1461 = vrot.slane %v1035, 7
  %v1462 = vrot.slane %v1036, 7
  %v1463 = vrot.slane %v1037, 7
  %v1464 = vrot.slane %v1038, 7
  %v1469 = vmul.f32 %v23, %v1461
  %v1470 = vmul.f32 %v24, %v1462
  %v1471 = vmul.f32 %v25, %v1463
  %v1472 = vmul.f32 %v26, %v1464
  %v1477 = vrot.slane %v1083, 5
  %v1478 = vrot.slane %v1084, 5
  %v1479 = vrot.slane %v1085, 5
  %v1480 = vrot.slane %v1086, 5
  %v1485 = vmul.f32 %v23, %v1477
  %v1486 = vmul.f32 %v24, %v1478
  %v1487 = vmul.f32 %v25, %v1479
  %v1488 = vmul.f32 %v26, %v1480
  %v1493 = vrot.slane %v1485, 1
  %v1494 = vrot.slane %v1486, 1
  %v1495 = vrot.slane %v1487, 1
  %v1496 = vrot.slane %v1488, 1
  %v1501 = vadd.f32 %v1469, %v1493
  %v1502 = vadd.f32 %v1470, %v1494
  %v1503 = vadd.f32 %v1471, %v1495
  %v1504 = vadd.f32 %v1472, %v1496
  %v1509 = vrot.slane %v1131, 7
  %v1510 = vrot.slane %v1132, 7
  %v1511 = vrot.slane %v1133, 7
  %v1512 = vrot.slane %v1134, 7
  %v1517 = vmul.f32 %v23, %v1509
  %v1518 = vmul.f32 %v24, %v1510
  %v1519 = vmul.f32 %v25, %v1511
  %v1520 = vmul.f32 %v26, %v1512
  %v1525 = vrot.slane %v1195, 5
  %v1526 = vrot.slane %v1196, 5
  %v1527 = vrot.slane %v1197, 5
  %v1528 = vrot.slane %v1198, 5
  %v1533 = vmul.f32 %v23, %v1525
  %v1534 = vmul.f32 %v24, %v1526
  %v1535 = vmul.f32 %v25, %v1527
  %v1536 = vmul.f32 %v26, %v1528
  %v1541 = vrot.slane %v1533, 1
  %v1542 = vrot.slane %v1534, 1
  %v1543 = vrot.slane %v1535, 1
  %v1544 = vrot.slane %v1536, 1
  %v1549 = vadd.f32 %v1517, %v1541
  %v1550 = vadd.f32 %v1518, %v1542
  %v1551 = vadd.f32 %v1519, %v1543
  %v1552 = vadd.f32 %v1520, %v1544
  %v1553 = vmul.f32 %v1549, 0.5
  %v1554 = vmul.f32 %v1550, 0.5
  %v1555 = vmul.f32 %v1551, 0.5
  %v1556 = vmul.f32 %v1552, 0.5
  %v1557 = vadd.f32 %v1501, %v1553
  %v1558 = vadd.f32 %v1502, %v1554
  %v1559 = vadd.f32 %v1503, %v1555
  %v1560 = vadd.f32 %v1504, %v1556
  %v1565 = vrot.slane %v903, 1
  %v1566 = vrot.slane %v904, 1
  %v1567 = vrot.slane %v905, 1
  %v1568 = vrot.slane %v906, 1
  %v1573 = vadd.f32 %v1557, %v1565
  %v1574 = vadd.f32 %v1558, %v1566
  %v1575 = vadd.f32 %v1559, %v1567
  %v1576 = vadd.f32 %v1560, %v1568
  %1581 = vst [vmem:[#allocation1] sm:$0xff] %v1573
  %1582 = vst [vmem:[#allocation1 + $0x9] sm:$0xff] %v1574
  %1583 = vst [vmem:[#allocation1 + $0x12] sm:$0xff] %v1575
  %1584 = vst [vmem:[#allocation1 + $0x1b] sm:$0xff] %v1576
  %s1585 = scalar_lea.vmem [#allocation1], 2
  %v1586 = vld [vmem:[%s1585] ss:$9 sm:$0xff]
  %s1588 = scalar_lea.vmem %s6, 2
  %1589 = vst.msk [vmem:[%s1588] ss:$4 sm:$0xf] %vm1401, %v1586
  // Predicated region
  $region26: #{delan_forward.1} parent=0 // pred_check
    _
  $region27: #{delan_forward.1} parent=0 // pred_check_branch
    %1591 = sbr.rel (0) target = $region29
  $region28: #{delan_forward.1} parent=0 // pred_region
    _
  $region29: #{delan_forward.1} parent=0 // pred_fallthru
    _
  // Predicated region
  $region30: #{delan_forward.1} parent=0 // pred_check
    _
  $region31: #{delan_forward.1} parent=0 // pred_check_branch
    %1593 = sbr.rel (0) target = $region33
  $region32: #{delan_forward.1} parent=0 // pred_region
    _
  $region33: #{delan_forward.1} parent=0 // pred_fallthru
    _

</llo_original>
